<compile_context>
chip_gen: v6e
topology: v6e:2x2x1
jax: 0.10.0
libtpu: 0.0.40
codegen_flags: <defaults>
</compile_context>

<pallas_src>
import jax
import jax.numpy as jnp
from jax.experimental import pallas as pl
from jax.experimental.pallas import tpu as pltpu

OUT_LANES = 128  # lane-dense output width (true logit broadcast to all lanes)


# -----------------------------------------------------------------------------
# Fused kernel: embedding + 2 RGCN layers + fc + sigmoid for one block of G
# graphs (GN = G * N rows).
#   feat_ref : (GN, F)            node input features (F = 2)
#   a_ref    : (R, GN, GN)        block-diagonal per-relation adjacency (bf16)
#   w1_ref   : ((R+1)*D, D)       layer-1 weights row-stacked [W_1;..;W_R;W_loop]
#   w2_ref   : ((R+1)*D, D)       layer-2 weights row-stacked
#   ewt_ref  : (F, D)             embedding Linear weight (transposed)
#   eb_ref   : (1, D)             embedding bias
#   b1_ref   : (1, D)             layer-1 bias
#   b2_ref   : (1, D)             layer-2 bias
#   fcw_ref  : (GN, D)            fc weight reshaped per node, tiled over G
#   sel_ref  : (G, GN)            per-graph row-block selector (0/1)
#   fcb_ref  : (1, 1)             fc bias
#   o_ref    : (G, OUT_LANES)     sigmoid(fc(...)) broadcast along lanes
# -----------------------------------------------------------------------------
def ppi_kernel(feat_ref, a_ref, w1_ref, w2_ref, ewt_ref, eb_ref, b1_ref,
               b2_ref, fcw_ref, sel_ref, fcb_ref, o_ref):
    num_rels = a_ref.shape[0]
    num_feat = feat_ref.shape[1]

    # EmbeddingLayer.n_embedding = Linear(2, h_dim): contraction depth is 2,
    # so do it on the VPU instead of wasting an MXU push/pop.
    h = eb_ref[...] + feat_ref[:, 0:1] * ewt_ref[0:1, :]
    for f in range(1, num_feat):
        h = h + feat_ref[:, f:f + 1] * ewt_ref[f:f + 1, :]

    # Hoist the adjacency load + bf16->f32 cast once for both layers.
    a = a_ref[...].astype(jnp.float32)                       # (R, GN, GN)

    def rgcn_layer(h, w_ref, b_ref, relu):
        # Aggregate-then-transform: A_r @ (h @ W_r) == (A_r @ h) @ W_r.
        # Lane-concat [A_1@h, ..., A_R@h, h] and transform with the
        # row-stacked weight in ONE deep MXU call (no serial add chain,
        # no identity-adjacency matmul for the self-loop).
        parts = [jnp.dot(a[r], h, preferred_element_type=jnp.float32)
                 for r in range(num_rels)]
        parts.append(h)                                      # self-loop term
        z = jnp.concatenate(parts, axis=1)                   # (GN, (R+1)*D)
        out = jnp.dot(z, w_ref[...],
                      preferred_element_type=jnp.float32) + b_ref[...]
        return jnp.maximum(out, 0.0) if relu else out

    h1 = rgcn_layer(h, w1_ref, b1_ref, relu=True)    # hidden layer 0 (ReLU)
    h2 = rgcn_layer(h1, w2_ref, b2_ref, relu=False)  # hidden layer 1 (no act,
    # matches act = relu if idx < num_hidden_layers-1 else None in the spec)
    # TODO(synk): dropout(p=0.3) is identity at inference; omitted.

    # Fused fc + sigmoid: logit[g] = sum_{n,d} h2[g*N+n, d] * fc_w[0, n*D+d].
    # Done as elementwise mul + per-graph block-sum (selector matmul + lane
    # reduce) so no in-kernel reshape of h2 is needed.
    prod = h2 * fcw_ref[...]                                  # (GN, D)
    gsum = jnp.dot(sel_ref[...], prod,
                   preferred_element_type=jnp.float32)        # (G, D)
    logit = jnp.sum(gsum, axis=1, keepdims=True) + fcb_ref[...]  # (G, 1)
    sig = 1.0 / (1.0 + jnp.exp(-logit))
    o_ref[...] = jnp.broadcast_to(sig, o_ref.shape).astype(o_ref.dtype)


def _default_graphs_per_block(batch):
    # v7x has 2 TensorCores per chip: keep one graph per grid step so the
    # "parallel" batch axis shards across them. v5e/v6e have a single TC, so
    # grid=(B,) is just serialized per-step overhead -> fold the whole batch
    # into the rows of one grid step.
    try:
        kind = jax.devices()[0].device_kind.lower()
    except Exception:
        kind = ""
    return 1 if ("v7" in kind and batch > 1) else batch


def fused_ppi(feat_rows, A_bd, W1s, W2s, ewt, eb, b1, b2, fcw, sel, fcb,
              *, graphs_per_block):
    nb, R, GN, _ = A_bd.shape
    G = graphs_per_block
    F = feat_rows.shape[1]
    D = ewt.shape[1]

    # advisory cost estimate so XLA overlaps the surrounding glue
    flops_per_block = (2 * GN * F * D
                       + 2 * (R * 2 * GN * GN * D + 2 * GN * (R + 1) * D * D)
                       + 2 * GN * D + 2 * G * GN * D)
    bytes_accessed = (4 * feat_rows.size + 2 * A_bd.size
                      + 4 * (W1s.size + W2s.size + ewt.size + eb.size
                             + b1.size + b2.size + fcw.size + sel.size
                             + fcb.size)
                      + 4 * nb * G * OUT_LANES)
    cost = pl.CostEstimate(flops=int(nb * flops_per_block),
                           transcendentals=int(nb * G),
                           bytes_accessed=int(bytes_accessed))

    # TODO(synk): for large N, tile the destination-node dim of A / the output
    # (extra grid axis) so the double-buffered (R, N_tile, N) slab stays under
    # v7x's 64 MiB VMEM, and raise vmem_limit_bytes on v6e; unnecessary at
    # this toy size.
    return pl.pallas_call(
        ppi_kernel,
        out_shape=jax.ShapeDtypeStruct((nb, G, OUT_LANES), jnp.float32),
        grid_spec=pltpu.PrefetchScalarGridSpec(
            num_scalar_prefetch=0,
            grid=(nb,),
            in_specs=[
                pl.BlockSpec((GN, F), lambda i: (i, 0)),                # feat
                pl.BlockSpec((None, R, GN, GN), lambda i: (i, 0, 0, 0)),  # A
                pl.BlockSpec(((R + 1) * D, D), lambda i: (0, 0)),       # W1s
                pl.BlockSpec(((R + 1) * D, D), lambda i: (0, 0)),       # W2s
                pl.BlockSpec((F, D), lambda i: (0, 0)),                 # emb_wT
                pl.BlockSpec((1, D), lambda i: (0, 0)),                 # emb_b
                pl.BlockSpec((1, D), lambda i: (0, 0)),                 # bias1
                pl.BlockSpec((1, D), lambda i: (0, 0)),                 # bias2
                pl.BlockSpec((GN, D), lambda i: (0, 0)),                # fc_w
                pl.BlockSpec((G, GN), lambda i: (0, 0)),                # sel
                pl.BlockSpec((1, 1), lambda i: (0, 0)),                 # fc_b
            ],
            out_specs=pl.BlockSpec((None, G, OUT_LANES), lambda i: (i, 0, 0)),
        ),
        compiler_params=pltpu.CompilerParams(
            dimension_semantics=("parallel",)),   # one graph per TC on v7x
        cost_estimate=cost,
    )(feat_rows, A_bd, W1s, W2s, ewt, eb, b1, b2, fcw, sel, fcb)


# -----------------------------------------------------------------------------
# Parameters (deterministic synthetic init, shapes follow the PyTorch module)
# -----------------------------------------------------------------------------
def init_params(key, h_dim, num_rels, num_bases, num_nodes, in_feat=2):
    ks = jax.random.split(key, 14)
    s = 0.1
    p = {}
    # EmbeddingLayer(2, num_rels, h_dim)
    p["emb_w"] = s * jax.random.normal(ks[0], (h_dim, in_feat), jnp.float32)
    p["emb_b"] = s * jax.random.normal(ks[1], (h_dim,), jnp.float32)
    p["rel_emb"] = s * jax.random.normal(ks[2], (num_rels, h_dim), jnp.float32)  # e_embedding (unused)
    # two RelGraphConv layers, basis regularizer
    for li, k0 in ((1, 3), (2, 7)):
        p[f"basis{li}"] = s * jax.random.normal(ks[k0 + 0], (num_bases, h_dim, h_dim), jnp.float32)
        p[f"comp{li}"] = s * jax.random.normal(ks[k0 + 1], (num_rels, num_bases), jnp.float32)
        p[f"loop{li}"] = s * jax.random.normal(ks[k0 + 2], (h_dim, h_dim), jnp.float32)
        p[f"bias{li}"] = s * jax.random.normal(ks[k0 + 3], (h_dim,), jnp.float32)
    # fc = Linear(num_nodes * h_dim, 1)
    p["fc_w"] = s * jax.random.normal(ks[11], (1, num_nodes * h_dim), jnp.float32)
    p["fc_b"] = s * jax.random.normal(ks[12], (1,), jnp.float32)
    return p


# -----------------------------------------------------------------------------
# Forward pass (single fused Pallas kernel + thin JAX glue)
# -----------------------------------------------------------------------------
def ppi_forward(params, feat, A, num_nodes, h_dim, graphs_per_block=None):
    B, N, F = feat.shape
    R = A.shape[1]
    D = h_dim
    G = graphs_per_block if graphs_per_block is not None else _default_graphs_per_block(B)
    assert B % G == 0
    nb = B // G
    GN = G * N

    # e_embedding(arange(num_rels)) is produced but discarded by PPIModel.forward
    _ = params["rel_emb"]

    # basis composition: W_r = sum_k comp[r,k] * basis_k  (tiny einsum: glue)
    W1 = jnp.einsum('rk,kio->rio', params["comp1"], params["basis1"])
    W2 = jnp.einsum('rk,kio->rio', params["comp2"], params["basis2"])
    # row-stacked weights [W_1; ...; W_R; W_loop]  ->  ((R+1)*D, D)
    W1s = jnp.concatenate([W1.reshape(R * D, D), params["loop1"]], axis=0)
    W2s = jnp.concatenate([W2.reshape(R * D, D), params["loop2"]], axis=0)

    # batch folding: block-diagonal adjacency over the G graphs of one grid
    # step; bf16 cast is exact for the 0/1 adjacency and halves its HBM bytes.
    A5 = A.reshape(nb, G, R, N, N)
    eyeG = jnp.eye(G, dtype=A.dtype)
    A_bd = jnp.einsum('bgrvu,gh->brgvhu', A5, eyeG).reshape(nb, R, GN, GN)
    A_bd = A_bd.astype(jnp.bfloat16)

    feat_rows = feat.reshape(B * N, F)

    # fc weight laid out per node (N, D) and tiled over the G graphs in a
    # block; per-graph selector for the row-block sums.
    fcw = jnp.tile(params["fc_w"].reshape(N, D), (G, 1))          # (GN, D)
    sel = jnp.repeat(jnp.eye(G, dtype=jnp.float32), N, axis=1)    # (G, GN)
    fcb = params["fc_b"].reshape(1, 1)

    out = fused_ppi(feat_rows, A_bd, W1s, W2s,
                    params["emb_w"].T,
                    params["emb_b"].reshape(1, -1),
                    params["bias1"].reshape(1, -1),
                    params["bias2"].reshape(1, -1),
                    fcw, sel, fcb,
                    graphs_per_block=G)               # (nb, G, OUT_LANES)

    # lane-dense kernel output: the true value sits in every lane; slice once.
    return out.reshape(B, OUT_LANES)[:, :1]


# Pure-JAX reference for numerical verification
def ppi_forward_ref(params, feat, A, num_nodes, h_dim):
    H = jnp.einsum('bnf,df->bnd', feat, params["emb_w"]) + params["emb_b"]
    W1 = jnp.einsum('rk,kio->rio', params["comp1"], params["basis1"])
    W2 = jnp.einsum('rk,kio->rio', params["comp2"], params["basis2"])

    def layer(H, W, Wl, bias, relu):
        msg = jnp.einsum('bud,rde->brue', H, W)
        agg = jnp.einsum('brvu,brue->bve', A, msg)
        out = agg + jnp.einsum('bvd,de->bve', H, Wl) + bias
        return jnp.maximum(out, 0.0) if relu else out

    H = layer(H, W1, params["loop1"], params["bias1"], True)
    H = layer(H, W2, params["loop2"], params["bias2"], False)
    x = H.reshape(H.shape[0], num_nodes * h_dim)
    return jax.nn.sigmoid(x @ params["fc_w"].T + params["fc_b"])


if __name__ == "__main__":
    B, N, D, R, NB = 2, 16, 32, 4, 2   # graphs, num_nodes, h_dim, num_rels, num_bases

    key = jax.random.PRNGKey(0)
    kp, kf, km, kr = jax.random.split(key, 4)

    params = init_params(kp, D, R, NB, N)

    # g.ndata['feat'] : (B*N, 2) node features -> laid out as (B, N, 2)
    feat = jax.random.normal(kf, (B, N, 2), jnp.float32)

    # random per-graph edges with one relation each -> dense (B, R, N, N)
    edge_mask = jax.random.bernoulli(km, 0.3, (B, N, N)).astype(jnp.float32)
    edge_rel = jax.random.randint(kr, (B, N, N), 0, R)
    A = jax.nn.one_hot(edge_rel, R, axis=1, dtype=jnp.float32) * edge_mask[:, None, :, :]

    out = ppi_forward(params, feat, A, N, D)
    out = jax.block_until_ready(out)

    ref = ppi_forward_ref(params, feat, A, N, D)
    assert out.shape == (B, 1), out.shape
    assert jnp.allclose(out, ref, rtol=1e-4, atol=1e-5), (out, ref)

    print("KERNEL_OK")
</pallas_src>

<mosaic_0001>
module attributes {stable_mosaic.version = 11 : i64} {
  func.func @ppi_kernel(%arg0: i32, %arg1: memref<32x2xf32, #tpu.memory_space<vmem>>, %arg2: memref<1x4x32x32xbf16, #tpu.memory_space<vmem>>, %arg3: memref<160x32xf32, #tpu.memory_space<vmem>>, %arg4: memref<160x32xf32, #tpu.memory_space<vmem>>, %arg5: memref<2x32xf32, #tpu.memory_space<vmem>>, %arg6: memref<1x32xf32, #tpu.memory_space<vmem>>, %arg7: memref<1x32xf32, #tpu.memory_space<vmem>>, %arg8: memref<1x32xf32, #tpu.memory_space<vmem>>, %arg9: memref<32x32xf32, #tpu.memory_space<vmem>>, %arg10: memref<2x32xf32, #tpu.memory_space<vmem>>, %arg11: memref<1x1xf32, #tpu.memory_space<vmem>>, %arg12: memref<1x2x128xf32, #tpu.memory_space<vmem>>) attributes {dimension_semantics = [#tpu.dimension_semantics<parallel>], iteration_bounds = array<i64: 1>, scalar_prefetch = 0 : i64, scratch_operands = 0 : i64, tpu.core_type = #tpu.core_type<tc>, window_params = [{transform_indices = @transform_0, window_bounds = array<i64: 32, 2>}, {transform_indices = @transform_1, window_bounds = array<i64: 1, 4, 32, 32>}, {pipeline_mode = #tpu.pipeline_mode<synchronous>, transform_indices = @transform_2, window_bounds = array<i64: 160, 32>}, {pipeline_mode = #tpu.pipeline_mode<synchronous>, transform_indices = @transform_3, window_bounds = array<i64: 160, 32>}, {pipeline_mode = #tpu.pipeline_mode<synchronous>, transform_indices = @transform_4, window_bounds = array<i64: 2, 32>}, {pipeline_mode = #tpu.pipeline_mode<synchronous>, transform_indices = @transform_5, window_bounds = array<i64: 1, 32>}, {pipeline_mode = #tpu.pipeline_mode<synchronous>, transform_indices = @transform_6, window_bounds = array<i64: 1, 32>}, {pipeline_mode = #tpu.pipeline_mode<synchronous>, transform_indices = @transform_7, window_bounds = array<i64: 1, 32>}, {pipeline_mode = #tpu.pipeline_mode<synchronous>, transform_indices = @transform_8, window_bounds = array<i64: 32, 32>}, {pipeline_mode = #tpu.pipeline_mode<synchronous>, transform_indices = @transform_9, window_bounds = array<i64: 2, 32>}, {pipeline_mode = #tpu.pipeline_mode<synchronous>, transform_indices = @transform_10, window_bounds = array<i64: 1, 1>}, {transform_indices = @transform_11, window_bounds = array<i64: 1, 2, 128>}]} {
    %c0 = arith.constant 0 : index
    %c0_0 = arith.constant 0 : index
    %0 = vector.load %arg6[%c0, %c0_0] : memref<1x32xf32, #tpu.memory_space<vmem>>, vector<1x32xf32>
    %c0_1 = arith.constant 0 : index
    %c0_2 = arith.constant 0 : index
    %1 = vector.load %arg1[%c0_1, %c0_2] : memref<32x2xf32, #tpu.memory_space<vmem>>, vector<32x1xf32>
    %c0_3 = arith.constant 0 : index
    %c0_4 = arith.constant 0 : index
    %2 = vector.load %arg5[%c0_3, %c0_4] : memref<2x32xf32, #tpu.memory_space<vmem>>, vector<1x32xf32>
    %3 = vector.broadcast %1 : vector<32x1xf32> to vector<32x32xf32>
    %4 = vector.broadcast %2 : vector<1x32xf32> to vector<32x32xf32>
    %5 = arith.mulf %3, %4 : vector<32x32xf32>
    %6 = vector.broadcast %0 : vector<1x32xf32> to vector<32x32xf32>
    %7 = arith.addf %6, %5 : vector<32x32xf32>
    %c0_5 = arith.constant 0 : index
    %c1 = arith.constant 1 : index
    %8 = vector.load %arg1[%c0_5, %c1] : memref<32x2xf32, #tpu.memory_space<vmem>>, vector<32x1xf32>
    %c1_6 = arith.constant 1 : index
    %c0_7 = arith.constant 0 : index
    %9 = vector.load %arg5[%c1_6, %c0_7] : memref<2x32xf32, #tpu.memory_space<vmem>>, vector<1x32xf32>
    %10 = vector.broadcast %8 : vector<32x1xf32> to vector<32x32xf32>
    %11 = vector.broadcast %9 : vector<1x32xf32> to vector<32x32xf32>
    %12 = arith.mulf %10, %11 : vector<32x32xf32>
    %13 = arith.addf %7, %12 : vector<32x32xf32>
    %c0_8 = arith.constant 0 : index
    %c0_9 = arith.constant 0 : index
    %c0_10 = arith.constant 0 : index
    %c0_11 = arith.constant 0 : index
    %14 = vector.load %arg2[%c0_8, %c0_9, %c0_10, %c0_11] : memref<1x4x32x32xbf16, #tpu.memory_space<vmem>>, vector<1x4x32x32xbf16>
    %15 = vector.shape_cast %14 : vector<1x4x32x32xbf16> to vector<4x32x32xbf16>
    %16 = arith.extf %15 : vector<4x32x32xbf16> to vector<4x32x32xf32>
    %17 = vector.extract_strided_slice %16 {offsets = [0, 0, 0], sizes = [1, 32, 32], strides = [1, 1, 1]} : vector<4x32x32xf32> to vector<1x32x32xf32>
    %18 = vector.shape_cast %17 : vector<1x32x32xf32> to vector<32x32xf32>
    %cst = arith.constant dense<0.000000e+00> : vector<32x32xf32>
    %19 = tpu.matmul %18, %13, %cst {dimension_numbers = #tpu.dot_dimension_numbers<[1], [0], [0], [1], [0, 0, 1, 1], [], []>} : vector<32x32xf32>, vector<32x32xf32>, vector<32x32xf32> -> vector<32x32xf32>
    %20 = vector.extract_strided_slice %16 {offsets = [1, 0, 0], sizes = [1, 32, 32], strides = [1, 1, 1]} : vector<4x32x32xf32> to vector<1x32x32xf32>
    %21 = vector.shape_cast %20 : vector<1x32x32xf32> to vector<32x32xf32>
    %cst_12 = arith.constant dense<0.000000e+00> : vector<32x32xf32>
    %22 = tpu.matmul %21, %13, %cst_12 {dimension_numbers = #tpu.dot_dimension_numbers<[1], [0], [0], [1], [0, 0, 1, 1], [], []>} : vector<32x32xf32>, vector<32x32xf32>, vector<32x32xf32> -> vector<32x32xf32>
    %23 = vector.extract_strided_slice %16 {offsets = [2, 0, 0], sizes = [1, 32, 32], strides = [1, 1, 1]} : vector<4x32x32xf32> to vector<1x32x32xf32>
    %24 = vector.shape_cast %23 : vector<1x32x32xf32> to vector<32x32xf32>
    %cst_13 = arith.constant dense<0.000000e+00> : vector<32x32xf32>
    %25 = tpu.matmul %24, %13, %cst_13 {dimension_numbers = #tpu.dot_dimension_numbers<[1], [0], [0], [1], [0, 0, 1, 1], [], []>} : vector<32x32xf32>, vector<32x32xf32>, vector<32x32xf32> -> vector<32x32xf32>
    %26 = vector.extract_strided_slice %16 {offsets = [3, 0, 0], sizes = [1, 32, 32], strides = [1, 1, 1]} : vector<4x32x32xf32> to vector<1x32x32xf32>
    %27 = vector.shape_cast %26 : vector<1x32x32xf32> to vector<32x32xf32>
    %cst_14 = arith.constant dense<0.000000e+00> : vector<32x32xf32>
    %28 = tpu.matmul %27, %13, %cst_14 {dimension_numbers = #tpu.dot_dimension_numbers<[1], [0], [0], [1], [0, 0, 1, 1], [], []>} : vector<32x32xf32>, vector<32x32xf32>, vector<32x32xf32> -> vector<32x32xf32>
    %29 = tpu.concatenate %19, %22, %25, %28, %13 in 1 : vector<32x32xf32>, vector<32x32xf32>, vector<32x32xf32>, vector<32x32xf32>, vector<32x32xf32> -> vector<32x160xf32>
    %c0_15 = arith.constant 0 : index
    %c0_16 = arith.constant 0 : index
    %30 = vector.load %arg3[%c0_15, %c0_16] : memref<160x32xf32, #tpu.memory_space<vmem>>, vector<160x32xf32>
    %cst_17 = arith.constant dense<0.000000e+00> : vector<32x32xf32>
    %31 = tpu.matmul %29, %30, %cst_17 {dimension_numbers = #tpu.dot_dimension_numbers<[1], [0], [0], [1], [0, 0, 1, 1], [], []>} : vector<32x160xf32>, vector<160x32xf32>, vector<32x32xf32> -> vector<32x32xf32>
    %c0_18 = arith.constant 0 : index
    %c0_19 = arith.constant 0 : index
    %32 = vector.load %arg7[%c0_18, %c0_19] : memref<1x32xf32, #tpu.memory_space<vmem>>, vector<1x32xf32>
    %33 = vector.broadcast %32 : vector<1x32xf32> to vector<32x32xf32>
    %34 = arith.addf %31, %33 : vector<32x32xf32>
    %cst_20 = arith.constant 0.000000e+00 : f32
    %35 = vector.broadcast %cst_20 : f32 to vector<32x32xf32>
    %36 = arith.maximumf %34, %35 : vector<32x32xf32>
    %37 = vector.extract_strided_slice %16 {offsets = [0, 0, 0], sizes = [1, 32, 32], strides = [1, 1, 1]} : vector<4x32x32xf32> to vector<1x32x32xf32>
    %38 = vector.shape_cast %37 : vector<1x32x32xf32> to vector<32x32xf32>
    %cst_21 = arith.constant dense<0.000000e+00> : vector<32x32xf32>
    %39 = tpu.matmul %38, %36, %cst_21 {dimension_numbers = #tpu.dot_dimension_numbers<[1], [0], [0], [1], [0, 0, 1, 1], [], []>} : vector<32x32xf32>, vector<32x32xf32>, vector<32x32xf32> -> vector<32x32xf32>
    %40 = vector.extract_strided_slice %16 {offsets = [1, 0, 0], sizes = [1, 32, 32], strides = [1, 1, 1]} : vector<4x32x32xf32> to vector<1x32x32xf32>
    %41 = vector.shape_cast %40 : vector<1x32x32xf32> to vector<32x32xf32>
    %cst_22 = arith.constant dense<0.000000e+00> : vector<32x32xf32>
    %42 = tpu.matmul %41, %36, %cst_22 {dimension_numbers = #tpu.dot_dimension_numbers<[1], [0], [0], [1], [0, 0, 1, 1], [], []>} : vector<32x32xf32>, vector<32x32xf32>, vector<32x32xf32> -> vector<32x32xf32>
    %43 = vector.extract_strided_slice %16 {offsets = [2, 0, 0], sizes = [1, 32, 32], strides = [1, 1, 1]} : vector<4x32x32xf32> to vector<1x32x32xf32>
    %44 = vector.shape_cast %43 : vector<1x32x32xf32> to vector<32x32xf32>
    %cst_23 = arith.constant dense<0.000000e+00> : vector<32x32xf32>
    %45 = tpu.matmul %44, %36, %cst_23 {dimension_numbers = #tpu.dot_dimension_numbers<[1], [0], [0], [1], [0, 0, 1, 1], [], []>} : vector<32x32xf32>, vector<32x32xf32>, vector<32x32xf32> -> vector<32x32xf32>
    %46 = vector.extract_strided_slice %16 {offsets = [3, 0, 0], sizes = [1, 32, 32], strides = [1, 1, 1]} : vector<4x32x32xf32> to vector<1x32x32xf32>
    %47 = vector.shape_cast %46 : vector<1x32x32xf32> to vector<32x32xf32>
    %cst_24 = arith.constant dense<0.000000e+00> : vector<32x32xf32>
    %48 = tpu.matmul %47, %36, %cst_24 {dimension_numbers = #tpu.dot_dimension_numbers<[1], [0], [0], [1], [0, 0, 1, 1], [], []>} : vector<32x32xf32>, vector<32x32xf32>, vector<32x32xf32> -> vector<32x32xf32>
    %49 = tpu.concatenate %39, %42, %45, %48, %36 in 1 : vector<32x32xf32>, vector<32x32xf32>, vector<32x32xf32>, vector<32x32xf32>, vector<32x32xf32> -> vector<32x160xf32>
    %c0_25 = arith.constant 0 : index
    %c0_26 = arith.constant 0 : index
    %50 = vector.load %arg4[%c0_25, %c0_26] : memref<160x32xf32, #tpu.memory_space<vmem>>, vector<160x32xf32>
    %cst_27 = arith.constant dense<0.000000e+00> : vector<32x32xf32>
    %51 = tpu.matmul %49, %50, %cst_27 {dimension_numbers = #tpu.dot_dimension_numbers<[1], [0], [0], [1], [0, 0, 1, 1], [], []>} : vector<32x160xf32>, vector<160x32xf32>, vector<32x32xf32> -> vector<32x32xf32>
    %c0_28 = arith.constant 0 : index
    %c0_29 = arith.constant 0 : index
    %52 = vector.load %arg8[%c0_28, %c0_29] : memref<1x32xf32, #tpu.memory_space<vmem>>, vector<1x32xf32>
    %53 = vector.broadcast %52 : vector<1x32xf32> to vector<32x32xf32>
    %54 = arith.addf %51, %53 : vector<32x32xf32>
    %c0_30 = arith.constant 0 : index
    %c0_31 = arith.constant 0 : index
    %55 = vector.load %arg9[%c0_30, %c0_31] : memref<32x32xf32, #tpu.memory_space<vmem>>, vector<32x32xf32>
    %56 = arith.mulf %54, %55 : vector<32x32xf32>
    %c0_32 = arith.constant 0 : index
    %c0_33 = arith.constant 0 : index
    %57 = vector.load %arg10[%c0_32, %c0_33] : memref<2x32xf32, #tpu.memory_space<vmem>>, vector<2x32xf32>
    %cst_34 = arith.constant dense<0.000000e+00> : vector<2x32xf32>
    %58 = tpu.matmul %57, %56, %cst_34 {dimension_numbers = #tpu.dot_dimension_numbers<[1], [0], [0], [1], [0, 0, 1, 1], [], []>} : vector<2x32xf32>, vector<32x32xf32>, vector<2x32xf32> -> vector<2x32xf32>
    %cst_35 = arith.constant dense<0.000000e+00> : vector<2xf32>
    %59 = vector.multi_reduction <add>, %58, %cst_35 [1] : vector<2x32xf32> to vector<2xf32>
    %60 = vector.shape_cast %59 : vector<2xf32> to vector<2x1xf32>
    %c0_36 = arith.constant 0 : index
    %c0_37 = arith.constant 0 : index
    %61 = vector.load %arg11[%c0_36, %c0_37] : memref<1x1xf32, #tpu.memory_space<vmem>>, vector<1x1xf32>
    %62 = vector.broadcast %61 : vector<1x1xf32> to vector<2x1xf32>
    %63 = arith.addf %60, %62 : vector<2x1xf32>
    %cst_38 = arith.constant 0.000000e+00 : f32
    %64 = vector.broadcast %cst_38 : f32 to vector<2x1xf32>
    %65 = arith.subf %64, %63 : vector<2x1xf32>
    %66 = math.exp %65 : vector<2x1xf32>
    %cst_39 = arith.constant 1.000000e+00 : f32
    %67 = vector.broadcast %cst_39 : f32 to vector<2x1xf32>
    %68 = arith.addf %67, %66 : vector<2x1xf32>
    %cst_40 = arith.constant 1.000000e+00 : f32
    %69 = vector.broadcast %cst_40 : f32 to vector<2x1xf32>
    %70 = arith.divf %69, %68 : vector<2x1xf32>
    %71 = vector.shape_cast %70 : vector<2x1xf32> to vector<2x1xf32>
    %72 = vector.broadcast %71 : vector<2x1xf32> to vector<2x128xf32>
    %c0_41 = arith.constant 0 : index
    %c0_42 = arith.constant 0 : index
    %c0_43 = arith.constant 0 : index
    %73 = vector.load %arg12[%c0_41, %c0_42, %c0_43] : memref<1x2x128xf32, #tpu.memory_space<vmem>>, vector<1x2x128xf32>
    %74 = vector.shape_cast %73 : vector<1x2x128xf32> to vector<2x128xf32>
    %75 = vector.shape_cast %72 : vector<2x128xf32> to vector<1x2x128xf32>
    tpu.vector_store %arg12[%c0_41, %c0_42, %c0_43], %75 {strides = array<i32>} : memref<1x2x128xf32, #tpu.memory_space<vmem>>, vector<1x2x128xf32>,
    return
  }
  func.func @transform_0(%arg0: i32) -> (i32, i32) {
    %c0_i32 = arith.constant 0 : i32
    %c0_i32_0 = arith.constant 0 : i32
    return %arg0, %c0_i32 : i32, i32
  }
  func.func @transform_1(%arg0: i32) -> (i32, i32, i32, i32) {
    %c0_i32 = arith.constant 0 : i32
    %c0_i32_0 = arith.constant 0 : i32
    %c0_i32_1 = arith.constant 0 : i32
    %c0_i32_2 = arith.constant 0 : i32
    return %arg0, %c0_i32, %c0_i32_0, %c0_i32_1 : i32, i32, i32, i32
  }
  func.func @transform_2(%arg0: i32) -> (i32, i32) {
    %c0_i32 = arith.constant 0 : i32
    %c0_i32_0 = arith.constant 0 : i32
    %c0_i32_1 = arith.constant 0 : i32
    return %c0_i32, %c0_i32_0 : i32, i32
  }
  func.func @transform_3(%arg0: i32) -> (i32, i32) {
    %c0_i32 = arith.constant 0 : i32
    %c0_i32_0 = arith.constant 0 : i32
    %c0_i32_1 = arith.constant 0 : i32
    return %c0_i32, %c0_i32_0 : i32, i32
  }
  func.func @transform_4(%arg0: i32) -> (i32, i32) {
    %c0_i32 = arith.constant 0 : i32
    %c0_i32_0 = arith.constant 0 : i32
    %c0_i32_1 = arith.constant 0 : i32
    return %c0_i32, %c0_i32_0 : i32, i32
  }
  func.func @transform_5(%arg0: i32) -> (i32, i32) {
    %c0_i32 = arith.constant 0 : i32
    %c0_i32_0 = arith.constant 0 : i32
    %c0_i32_1 = arith.constant 0 : i32
    return %c0_i32, %c0_i32_0 : i32, i32
  }
  func.func @transform_6(%arg0: i32) -> (i32, i32) {
    %c0_i32 = arith.constant 0 : i32
    %c0_i32_0 = arith.constant 0 : i32
    %c0_i32_1 = arith.constant 0 : i32
    return %c0_i32, %c0_i32_0 : i32, i32
  }
  func.func @transform_7(%arg0: i32) -> (i32, i32) {
    %c0_i32 = arith.constant 0 : i32
    %c0_i32_0 = arith.constant 0 : i32
    %c0_i32_1 = arith.constant 0 : i32
    return %c0_i32, %c0_i32_0 : i32, i32
  }
  func.func @transform_8(%arg0: i32) -> (i32, i32) {
    %c0_i32 = arith.constant 0 : i32
    %c0_i32_0 = arith.constant 0 : i32
    %c0_i32_1 = arith.constant 0 : i32
    return %c0_i32, %c0_i32_0 : i32, i32
  }
  func.func @transform_9(%arg0: i32) -> (i32, i32) {
    %c0_i32 = arith.constant 0 : i32
    %c0_i32_0 = arith.constant 0 : i32
    %c0_i32_1 = arith.constant 0 : i32
    return %c0_i32, %c0_i32_0 : i32, i32
  }
  func.func @transform_10(%arg0: i32) -> (i32, i32) {
    %c0_i32 = arith.constant 0 : i32
    %c0_i32_0 = arith.constant 0 : i32
    %c0_i32_1 = arith.constant 0 : i32
    return %c0_i32, %c0_i32_0 : i32, i32
  }
  func.func @transform_11(%arg0: i32) -> (i32, i32, i32) {
    %c0_i32 = arith.constant 0 : i32
    %c0_i32_0 = arith.constant 0 : i32
    %c0_i32_1 = arith.constant 0 : i32
    return %arg0, %c0_i32, %c0_i32_0 : i32, i32, i32
  }
}

</mosaic_0001>

<llo_original>
// kernel: tpu_custom_call.1
$region0: #{tpu_custom_call.1}
  #allocation0 [shape = 'u32[]', space=smem, size = 0x4, offset = 0x4, fixed_abs, tag = 'smem constant byte address 0x4 - core index']
  #allocation1 [shape = 'u32[144,128]{1,0:T(1,128)}', space=vmem, size = 0x12000, scoped, tag = 'internal scratch']
  #allocation2 [shape = 'f32[1,1]{1,0:T(1,128)S(1)}', space=vmem, size = 0x200, scoped, tag = 'scoped memory for tpu_custom_call.1']
  %s0 = inlined_call_operand.vmem [shape: f32[32,2], index: 0, kind: input, shape index: {}]
  %s1 = inlined_call_operand.vmem [shape: bf16[1,4,32,32], index: 1, kind: input, shape index: {}]
  %s2 = inlined_call_operand.vmem [shape: f32[160,32], index: 2, kind: input, shape index: {}]
  %s3 = inlined_call_operand.vmem [shape: f32[160,32], index: 3, kind: input, shape index: {}]
  %s4 = inlined_call_operand.vmem [shape: f32[2,32], index: 4, kind: input, shape index: {}]
  %s5 = inlined_call_operand.vmem [shape: f32[1,32], index: 5, kind: input, shape index: {}]
  %s6 = inlined_call_operand.vmem [shape: f32[1,32], index: 6, kind: input, shape index: {}]
  %s7 = inlined_call_operand.vmem [shape: f32[1,32], index: 7, kind: input, shape index: {}]
  %s8 = inlined_call_operand.vmem [shape: f32[32,32], index: 8, kind: input, shape index: {}]
  %s9 = inlined_call_operand.vmem [shape: f32[2,32], index: 9, kind: input, shape index: {}]
  %s10 = inlined_call_operand.<no memory space> [shape: f32[1,1], index: 10, kind: input, shape index: {}]
  %s11 = inlined_call_operand.hbm [shape: f32[1,2,128], index: 11, kind: output, shape index: {}]
  %s12 = sld [smem:[#allocation0]]
  $region54: #{tpu_custom_call.1} parent=0
    _
  %s14 = ssub.s32 1, %s12
  %s15 = scalar_select 0, %s14, %s12
  %v16 = vstv %s10
  %17 = vst [vmem:[#allocation2] sm:$0x1] %v16
  $region1: #{tpu_custom_call.1} parent=0
    #allocation3 [shape = 'u8[1024]{0}', space=vmem, size = 0x400, scoped, tag = 'output window, operand 0, single buffered']
    #allocation4 [shape = 's32[1]{0}', space=sflag, size = 0x4, scoped, tag = 'scoped memory for tpu_custom_call.1']
    %18 = vsyncpa [#allocation4], 0
    // Predicated region
    $region2: #{tpu_custom_call.1} parent=1 // pred_check
      _
    $region3: #{tpu_custom_call.1} parent=1 // pred_check_branch
      %20 = sbr.rel (0) target = $region5
    $region4: #{tpu_custom_call.1} parent=1 // pred_region
      _
    $region5: #{tpu_custom_call.1} parent=1 // pred_fallthru
      _
    // Predicated region
    $region6: #{tpu_custom_call.1} parent=1 // pred_check
      _
    $region7: #{tpu_custom_call.1} parent=1 // pred_check_branch
      %22 = sbr.rel (0) target = $region9
    $region8: #{tpu_custom_call.1} parent=1 // pred_region
      _
    $region9: #{tpu_custom_call.1} parent=1 // pred_fallthru
      _
    // Predicated region
    $region10: #{tpu_custom_call.1} parent=1 // pred_check
      _
    $region11: #{tpu_custom_call.1} parent=1 // pred_check_branch
      %24 = sbr.rel (0) target = $region13
    $region12: #{tpu_custom_call.1} parent=1 // pred_region
      _
    $region13: #{tpu_custom_call.1} parent=1 // pred_fallthru
      _
    // Predicated region
    $region14: #{tpu_custom_call.1} parent=1 // pred_check
      _
    $region15: #{tpu_custom_call.1} parent=1 // pred_check_branch
      %26 = sbr.rel (0) target = $region17
    $region16: #{tpu_custom_call.1} parent=1 // pred_region
      _
    $region17: #{tpu_custom_call.1} parent=1 // pred_fallthru
      _
    // Predicated region
    $region18: #{tpu_custom_call.1} parent=1 // pred_check
      _
    $region19: #{tpu_custom_call.1} parent=1 // pred_check_branch
      %28 = sbr.rel (0) target = $region21
    $region20: #{tpu_custom_call.1} parent=1 // pred_region
      _
    $region21: #{tpu_custom_call.1} parent=1 // pred_fallthru
      _
    // Predicated region
    $region22: #{tpu_custom_call.1} parent=1 // pred_check
      _
    $region23: #{tpu_custom_call.1} parent=1 // pred_check_branch
      %30 = sbr.rel (0) target = $region25
    $region24: #{tpu_custom_call.1} parent=1 // pred_region
      _
    $region25: #{tpu_custom_call.1} parent=1 // pred_fallthru
      _
    // Predicated region
    $region26: #{tpu_custom_call.1} parent=1 // pred_check
      _
    $region27: #{tpu_custom_call.1} parent=1 // pred_check_branch
      %32 = sbr.rel (0) target = $region29
    $region28: #{tpu_custom_call.1} parent=1 // pred_region
      _
    $region29: #{tpu_custom_call.1} parent=1 // pred_fallthru
      _
    // Predicated region
    $region30: #{tpu_custom_call.1} parent=1 // pred_check
      _
    $region31: #{tpu_custom_call.1} parent=1 // pred_check_branch
      %34 = sbr.rel (0) target = $region33
    $region32: #{tpu_custom_call.1} parent=1 // pred_region
      _
    $region33: #{tpu_custom_call.1} parent=1 // pred_fallthru
      _
    // Predicated region
    $region34: #{tpu_custom_call.1} parent=1 // pred_check
      _
    $region35: #{tpu_custom_call.1} parent=1 // pred_check_branch
      %36 = sbr.rel (0) target = $region37
    $region36: #{tpu_custom_call.1} parent=1 // pred_region
      _
    $region37: #{tpu_custom_call.1} parent=1 // pred_fallthru
      _
    // Predicated region
    $region38: #{tpu_custom_call.1} parent=1 // pred_check
      _
    $region39: #{tpu_custom_call.1} parent=1 // pred_check_branch
      %38 = sbr.rel (0) target = $region41
    $region40: #{tpu_custom_call.1} parent=1 // pred_region
      _
    $region41: #{tpu_custom_call.1} parent=1 // pred_fallthru
      _
    // Predicated region
    $region42: #{tpu_custom_call.1} parent=1 // pred_check
      _
    $region43: #{tpu_custom_call.1} parent=1 // pred_check_branch
      %40 = sbr.rel (0) target = $region45
    $region44: #{tpu_custom_call.1} parent=1 // pred_region
      _
    $region45: #{tpu_custom_call.1} parent=1 // pred_fallthru
      _
    %v41 = vld [vmem:[%s5] sm:$0x1]
    %v42 = vld [vmem:[%s0] sm:$0xff]
    %v43 = vld [vmem:[%s0 + $0x8] sm:$0xff]
    %v44 = vld [vmem:[%s0 + $0x10] sm:$0xff]
    %v45 = vld [vmem:[%s0 + $0x18] sm:$0xff]
    %v46 = vld [vmem:[%s4] sm:$0x1]
    %48 = vset.pattern.permute.xlu0 0
    %49 = vperm.xlu0 %48, %v42
    %v50 = vpop.permute.xlu0 %49
    %53 = vset.pattern.permute.xlu0 0
    %54 = vperm.xlu0 %53, %v43
    %v55 = vpop.permute.xlu0 %54
    %58 = vset.pattern.permute.xlu0 0
    %59 = vperm.xlu0 %58, %v44
    %v60 = vpop.permute.xlu0 %59
    %63 = vset.pattern.permute.xlu0 0
    %64 = vperm.xlu0 %63, %v45
    %v65 = vpop.permute.xlu0 %64
    %v67 = vlaneseq
    %v68 = vshrl.u32 %v67, 7
    %v69 = vsub.s32 0, %v68
    %v70 = vrot.slane %v46, %v69
    %v71 = vmul.f32 %v50, %v70
    %v72 = vmul.f32 %v55, %v70
    %v73 = vmul.f32 %v60, %v70
    %v74 = vmul.f32 %v65, %v70
    %v76 = vlaneseq
    %v77 = vshrl.u32 %v76, 7
    %v78 = vsub.s32 0, %v77
    %v79 = vrot.slane %v41, %v78
    %v81 = vadd.f32 %v79, %v71
    %v82 = vadd.f32 %v79, %v72
    %v83 = vadd.f32 %v79, %v73
    %v84 = vadd.f32 %v79, %v74
    %v85 = vld [vmem:[%s4 + $0x1] sm:$0x1]
    %86 = vset.pattern.permute.xlu0 1
    %87 = vperm.xlu0 %86, %v42
    %v88 = vpop.permute.xlu0 %87
    %90 = vset.pattern.permute.xlu0 1
    %91 = vperm.xlu0 %90, %v43
    %v92 = vpop.permute.xlu0 %91
    %94 = vset.pattern.permute.xlu0 1
    %95 = vperm.xlu0 %94, %v44
    %v96 = vpop.permute.xlu0 %95
    %98 = vset.pattern.permute.xlu0 1
    %99 = vperm.xlu0 %98, %v45
    %v100 = vpop.permute.xlu0 %99
    %v102 = vlaneseq
    %v103 = vshrl.u32 %v102, 7
    %v104 = vsub.s32 0, %v103
    %v105 = vrot.slane %v85, %v104
    %v106 = vmul.f32 %v88, %v105
    %v107 = vmul.f32 %v92, %v105
    %v108 = vmul.f32 %v96, %v105
    %v109 = vmul.f32 %v100, %v105
    %v110 = vadd.f32 %v81, %v106
    %v111 = vadd.f32 %v82, %v107
    %v112 = vadd.f32 %v83, %v108
    %v113 = vadd.f32 %v84, %v109
    %v114 = vld [vmem:[%s1] sm:$0xf]
    %v115 = vld [vmem:[%s1 + $0x4] sm:$0xf]
    %v116 = vld [vmem:[%s1 + $0x8] sm:$0xf]
    %v117 = vld [vmem:[%s1 + $0xc] sm:$0xf]
    %v118 = vld [vmem:[%s1 + $0x10] sm:$0xf]
    %v119 = vld [vmem:[%s1 + $0x14] sm:$0xf]
    %v120 = vld [vmem:[%s1 + $0x18] sm:$0xf]
    %v121 = vld [vmem:[%s1 + $0x1c] sm:$0xf]
    %v122 = vld [vmem:[%s1 + $0x20] sm:$0xf]
    %v123 = vld [vmem:[%s1 + $0x24] sm:$0xf]
    %v124 = vld [vmem:[%s1 + $0x28] sm:$0xf]
    %v125 = vld [vmem:[%s1 + $0x2c] sm:$0xf]
    %v126 = vld [vmem:[%s1 + $0x30] sm:$0xf]
    %v127 = vld [vmem:[%s1 + $0x34] sm:$0xf]
    %v128 = vld [vmem:[%s1 + $0x38] sm:$0xf]
    %v129 = vld [vmem:[%s1 + $0x3c] sm:$0xf]
    %v130 = vunpack.c.l.bf16 %v114
    %v131 = vunpack.c.l.bf16 %v115
    %v132 = vunpack.c.l.bf16 %v116
    %v133 = vunpack.c.l.bf16 %v117
    %v134 = vunpack.c.l.bf16 %v118
    %v135 = vunpack.c.l.bf16 %v119
    %v136 = vunpack.c.l.bf16 %v120
    %v137 = vunpack.c.l.bf16 %v121
    %v138 = vunpack.c.l.bf16 %v122
    %v139 = vunpack.c.l.bf16 %v123
    %v140 = vunpack.c.l.bf16 %v124
    %v141 = vunpack.c.l.bf16 %v125
    %v142 = vunpack.c.l.bf16 %v126
    %v143 = vunpack.c.l.bf16 %v127
    %v144 = vunpack.c.l.bf16 %v128
    %v145 = vunpack.c.l.bf16 %v129
    %vm146 = vcmask 261120
    %v148 = vsel %vm146, %v130, 0
    %v151 = vsel %vm146, %v131, 0
    %v154 = vsel %vm146, %v132, 0
    %v157 = vsel %vm146, %v133, 0
    %159 = vmatprep.subr.mxu0 0.0
    %160 = vmatpush1.msra.mxu0 0.0
    %161 = vmatprep.subr.mxu0 0.0
    %162 = vmatpush1.msra.mxu0 0.0
    %163 = vmatprep.subr.mxu0 0.0
    %164 = vmatpush1.msra.mxu0 0.0
    %165 = vmatprep.subr.mxu0 0.0
    %166 = vmatpush1.msra.mxu0 0.0
    %167 = vmatprep.subr.mxu0 0.0
    %168 = vmatpush1.msra.mxu0 0.0
    %169 = vmatprep.subr.mxu0 0.0
    %170 = vmatpush1.msra.mxu0 0.0
    %171 = vmatprep.subr.mxu0 0.0
    %172 = vmatpush1.msra.mxu0 0.0
    %173 = vmatprep.subr.mxu0 0.0
    %174 = vmatpush1.msra.mxu0 0.0
    %175 = vmatprep.subr.mxu0 0.0
    %176 = vmatpush1.msra.mxu0 0.0
    %177 = vmatprep.subr.mxu0 0.0
    %178 = vmatpush1.msra.mxu0 0.0
    %179 = vmatprep.subr.mxu0 0.0
    %180 = vmatpush1.msra.mxu0 0.0
    %181 = vmatprep.subr.mxu0 0.0
    %182 = vmatpush1.msra.mxu0 0.0
    %183 = vmatprep.subr.mxu0 0.0
    %184 = vmatpush1.msra.mxu0 %v113
    %185 = vmatprep.subr.mxu0 0.0
    %186 = vmatpush1.msra.mxu0 %v112
    %187 = vmatprep.subr.mxu0 0.0
    %188 = vmatpush1.msra.mxu0 %v111
    %189 = vmatprep.subr.mxu0 0.0
    %190 = vmatpush1.msra.mxu0 %v110
    %191 = vmatprep.subr.mxu0 0.0
    %192 = vmatpush2.msra.mxu0 0.0
    %193 = vmatprep.subr.mxu0 0.0
    %194 = vmatpush2.msra.mxu0 0.0
    %195 = vmatprep.subr.mxu0 0.0
    %196 = vmatpush2.msra.mxu0 0.0
    %197 = vmatprep.subr.mxu0 0.0
    %198 = vmatpush2.msra.mxu0 0.0
    %199 = vmatprep.subr.mxu0 0.0
    %200 = vmatpush2.msra.mxu0 0.0
    %201 = vmatprep.subr.mxu0 0.0
    %202 = vmatpush2.msra.mxu0 0.0
    %203 = vmatprep.subr.mxu0 0.0
    %204 = vmatpush2.msra.mxu0 0.0
    %205 = vmatprep.subr.mxu0 0.0
    %206 = vmatpush2.msra.mxu0 0.0
    %207 = vmatprep.subr.mxu0 0.0
    %208 = vmatpush2.msra.mxu0 0.0
    %209 = vmatprep.subr.mxu0 0.0
    %210 = vmatpush2.msra.mxu0 0.0
    %211 = vmatprep.subr.mxu0 0.0
    %212 = vmatpush2.msra.mxu0 0.0
    %213 = vmatprep.subr.mxu0 0.0
    %214 = vmatpush2.msra.mxu0 0.0
    %215 = vmatprep.subr.mxu0 0.0
    %216 = vmatpush2.msra.mxu0 0.0
    %217 = vmatprep.subr.mxu0 0.0
    %218 = vmatpush2.msra.mxu0 0.0
    %219 = vmatprep.subr.mxu0 0.0
    %220 = vmatpush2.msra.mxu0 0.0
    %221 = vmatprep.subr.mxu0 0.0
    %222 = vmatpush2.msra.mxu0 0.0
    %223 = vmatprep.mubr.f32.mxu0 0.0
    %224 = vmatmul.mubr.f32.gmra.mxu0 %v148
    %v225 = vpop.f32.mrf.mxu0
    %v226 = vadd.f32 0.0, %v225
    %v227 = vpop.f32.mrf.mxu0
    %228 = vmatprep.mubr.f32.mxu0 0.0
    %229 = vmatmul.mubr.f32.gmra.mxu0 %v151
    %v230 = vpop.f32.mrf.mxu0
    %v231 = vadd.f32 0.0, %v230
    %v232 = vpop.f32.mrf.mxu0
    %233 = vmatprep.mubr.f32.mxu0 0.0
    %234 = vmatmul.mubr.f32.gmra.mxu0 %v154
    %v235 = vpop.f32.mrf.mxu0
    %v236 = vadd.f32 0.0, %v235
    %v237 = vpop.f32.mrf.mxu0
    %238 = vmatprep.mubr.f32.mxu0 0.0
    %239 = vmatmul.mubr.f32.gmra.mxu0 %v157
    %v240 = vpop.f32.mrf.mxu0
    %v241 = vadd.f32 0.0, %v240
    %v242 = vpop.f32.mrf.mxu0
    %243 = vdwg.mxu0
    %v245 = vsel %vm146, %v134, 0
    %v248 = vsel %vm146, %v135, 0
    %v251 = vsel %vm146, %v136, 0
    %v254 = vsel %vm146, %v137, 0
    %256 = vmatprep.subr.mxu0 0.0
    %257 = vmatpush1.msra.mxu0 0.0
    %258 = vmatprep.subr.mxu0 0.0
    %259 = vmatpush1.msra.mxu0 0.0
    %260 = vmatprep.subr.mxu0 0.0
    %261 = vmatpush1.msra.mxu0 0.0
    %262 = vmatprep.subr.mxu0 0.0
    %263 = vmatpush1.msra.mxu0 0.0
    %264 = vmatprep.subr.mxu0 0.0
    %265 = vmatpush1.msra.mxu0 0.0
    %266 = vmatprep.subr.mxu0 0.0
    %267 = vmatpush1.msra.mxu0 0.0
    %268 = vmatprep.subr.mxu0 0.0
    %269 = vmatpush1.msra.mxu0 0.0
    %270 = vmatprep.subr.mxu0 0.0
    %271 = vmatpush1.msra.mxu0 0.0
    %272 = vmatprep.subr.mxu0 0.0
    %273 = vmatpush1.msra.mxu0 0.0
    %274 = vmatprep.subr.mxu0 0.0
    %275 = vmatpush1.msra.mxu0 0.0
    %276 = vmatprep.subr.mxu0 0.0
    %277 = vmatpush1.msra.mxu0 0.0
    %278 = vmatprep.subr.mxu0 0.0
    %279 = vmatpush1.msra.mxu0 0.0
    %280 = vmatprep.subr.mxu0 0.0
    %281 = vmatpush1.msra.mxu0 %v113
    %282 = vmatprep.subr.mxu0 0.0
    %283 = vmatpush1.msra.mxu0 %v112
    %284 = vmatprep.subr.mxu0 0.0
    %285 = vmatpush1.msra.mxu0 %v111
    %286 = vmatprep.subr.mxu0 0.0
    %287 = vmatpush1.msra.mxu0 %v110
    %288 = vmatprep.subr.mxu0 0.0
    %289 = vmatpush2.msra.mxu0 0.0
    %290 = vmatprep.subr.mxu0 0.0
    %291 = vmatpush2.msra.mxu0 0.0
    %292 = vmatprep.subr.mxu0 0.0
    %293 = vmatpush2.msra.mxu0 0.0
    %294 = vmatprep.subr.mxu0 0.0
    %295 = vmatpush2.msra.mxu0 0.0
    %296 = vmatprep.subr.mxu0 0.0
    %297 = vmatpush2.msra.mxu0 0.0
    %298 = vmatprep.subr.mxu0 0.0
    %299 = vmatpush2.msra.mxu0 0.0
    %300 = vmatprep.subr.mxu0 0.0
    %301 = vmatpush2.msra.mxu0 0.0
    %302 = vmatprep.subr.mxu0 0.0
    %303 = vmatpush2.msra.mxu0 0.0
    %304 = vmatprep.subr.mxu0 0.0
    %305 = vmatpush2.msra.mxu0 0.0
    %306 = vmatprep.subr.mxu0 0.0
    %307 = vmatpush2.msra.mxu0 0.0
    %308 = vmatprep.subr.mxu0 0.0
    %309 = vmatpush2.msra.mxu0 0.0
    %310 = vmatprep.subr.mxu0 0.0
    %311 = vmatpush2.msra.mxu0 0.0
    %312 = vmatprep.subr.mxu0 0.0
    %313 = vmatpush2.msra.mxu0 0.0
    %314 = vmatprep.subr.mxu0 0.0
    %315 = vmatpush2.msra.mxu0 0.0
    %316 = vmatprep.subr.mxu0 0.0
    %317 = vmatpush2.msra.mxu0 0.0
    %318 = vmatprep.subr.mxu0 0.0
    %319 = vmatpush2.msra.mxu0 0.0
    %320 = vmatprep.mubr.f32.mxu0 0.0
    %321 = vmatmul.mubr.f32.gmra.mxu0 %v245
    %v322 = vpop.f32.mrf.mxu0
    %v323 = vadd.f32 0.0, %v322
    %v324 = vpop.f32.mrf.mxu0
    %325 = vmatprep.mubr.f32.mxu0 0.0
    %326 = vmatmul.mubr.f32.gmra.mxu0 %v248
    %v327 = vpop.f32.mrf.mxu0
    %v328 = vadd.f32 0.0, %v327
    %v329 = vpop.f32.mrf.mxu0
    %330 = vmatprep.mubr.f32.mxu0 0.0
    %331 = vmatmul.mubr.f32.gmra.mxu0 %v251
    %v332 = vpop.f32.mrf.mxu0
    %v333 = vadd.f32 0.0, %v332
    %v334 = vpop.f32.mrf.mxu0
    %335 = vmatprep.mubr.f32.mxu0 0.0
    %336 = vmatmul.mubr.f32.gmra.mxu0 %v254
    %v337 = vpop.f32.mrf.mxu0
    %v338 = vadd.f32 0.0, %v337
    %v339 = vpop.f32.mrf.mxu0
    %340 = vdwg.mxu0
    %v342 = vsel %vm146, %v138, 0
    %v345 = vsel %vm146, %v139, 0
    %v348 = vsel %vm146, %v140, 0
    %v351 = vsel %vm146, %v141, 0
    %353 = vmatprep.subr.mxu0 0.0
    %354 = vmatpush1.msra.mxu0 0.0
    %355 = vmatprep.subr.mxu0 0.0
    %356 = vmatpush1.msra.mxu0 0.0
    %357 = vmatprep.subr.mxu0 0.0
    %358 = vmatpush1.msra.mxu0 0.0
    %359 = vmatprep.subr.mxu0 0.0
    %360 = vmatpush1.msra.mxu0 0.0
    %361 = vmatprep.subr.mxu0 0.0
    %362 = vmatpush1.msra.mxu0 0.0
    %363 = vmatprep.subr.mxu0 0.0
    %364 = vmatpush1.msra.mxu0 0.0
    %365 = vmatprep.subr.mxu0 0.0
    %366 = vmatpush1.msra.mxu0 0.0
    %367 = vmatprep.subr.mxu0 0.0
    %368 = vmatpush1.msra.mxu0 0.0
    %369 = vmatprep.subr.mxu0 0.0
    %370 = vmatpush1.msra.mxu0 0.0
    %371 = vmatprep.subr.mxu0 0.0
    %372 = vmatpush1.msra.mxu0 0.0
    %373 = vmatprep.subr.mxu0 0.0
    %374 = vmatpush1.msra.mxu0 0.0
    %375 = vmatprep.subr.mxu0 0.0
    %376 = vmatpush1.msra.mxu0 0.0
    %377 = vmatprep.subr.mxu0 0.0
    %378 = vmatpush1.msra.mxu0 %v113
    %379 = vmatprep.subr.mxu0 0.0
    %380 = vmatpush1.msra.mxu0 %v112
    %381 = vmatprep.subr.mxu0 0.0
    %382 = vmatpush1.msra.mxu0 %v111
    %383 = vmatprep.subr.mxu0 0.0
    %384 = vmatpush1.msra.mxu0 %v110
    %385 = vmatprep.subr.mxu0 0.0
    %386 = vmatpush2.msra.mxu0 0.0
    %387 = vmatprep.subr.mxu0 0.0
    %388 = vmatpush2.msra.mxu0 0.0
    %389 = vmatprep.subr.mxu0 0.0
    %390 = vmatpush2.msra.mxu0 0.0
    %391 = vmatprep.subr.mxu0 0.0
    %392 = vmatpush2.msra.mxu0 0.0
    %393 = vmatprep.subr.mxu0 0.0
    %394 = vmatpush2.msra.mxu0 0.0
    %395 = vmatprep.subr.mxu0 0.0
    %396 = vmatpush2.msra.mxu0 0.0
    %397 = vmatprep.subr.mxu0 0.0
    %398 = vmatpush2.msra.mxu0 0.0
    %399 = vmatprep.subr.mxu0 0.0
    %400 = vmatpush2.msra.mxu0 0.0
    %401 = vmatprep.subr.mxu0 0.0
    %402 = vmatpush2.msra.mxu0 0.0
    %403 = vmatprep.subr.mxu0 0.0
    %404 = vmatpush2.msra.mxu0 0.0
    %405 = vmatprep.subr.mxu0 0.0
    %406 = vmatpush2.msra.mxu0 0.0
    %407 = vmatprep.subr.mxu0 0.0
    %408 = vmatpush2.msra.mxu0 0.0
    %409 = vmatprep.subr.mxu0 0.0
    %410 = vmatpush2.msra.mxu0 0.0
    %411 = vmatprep.subr.mxu0 0.0
    %412 = vmatpush2.msra.mxu0 0.0
    %413 = vmatprep.subr.mxu0 0.0
    %414 = vmatpush2.msra.mxu0 0.0
    %415 = vmatprep.subr.mxu0 0.0
    %416 = vmatpush2.msra.mxu0 0.0
    %417 = vmatprep.mubr.f32.mxu0 0.0
    %418 = vmatmul.mubr.f32.gmra.mxu0 %v342
    %v419 = vpop.f32.mrf.mxu0
    %v420 = vadd.f32 0.0, %v419
    %v421 = vpop.f32.mrf.mxu0
    %422 = vmatprep.mubr.f32.mxu0 0.0
    %423 = vmatmul.mubr.f32.gmra.mxu0 %v345
    %v424 = vpop.f32.mrf.mxu0
    %v425 = vadd.f32 0.0, %v424
    %v426 = vpop.f32.mrf.mxu0
    %427 = vmatprep.mubr.f32.mxu0 0.0
    %428 = vmatmul.mubr.f32.gmra.mxu0 %v348
    %v429 = vpop.f32.mrf.mxu0
    %v430 = vadd.f32 0.0, %v429
    %v431 = vpop.f32.mrf.mxu0
    %432 = vmatprep.mubr.f32.mxu0 0.0
    %433 = vmatmul.mubr.f32.gmra.mxu0 %v351
    %v434 = vpop.f32.mrf.mxu0
    %v435 = vadd.f32 0.0, %v434
    %v436 = vpop.f32.mrf.mxu0
    %437 = vdwg.mxu0
    %v439 = vsel %vm146, %v142, 0
    %v442 = vsel %vm146, %v143, 0
    %v445 = vsel %vm146, %v144, 0
    %v448 = vsel %vm146, %v145, 0
    %450 = vmatprep.subr.mxu0 0.0
    %451 = vmatpush1.msra.mxu0 0.0
    %452 = vmatprep.subr.mxu0 0.0
    %453 = vmatpush1.msra.mxu0 0.0
    %454 = vmatprep.subr.mxu0 0.0
    %455 = vmatpush1.msra.mxu0 0.0
    %456 = vmatprep.subr.mxu0 0.0
    %457 = vmatpush1.msra.mxu0 0.0
    %458 = vmatprep.subr.mxu0 0.0
    %459 = vmatpush1.msra.mxu0 0.0
    %460 = vmatprep.subr.mxu0 0.0
    %461 = vmatpush1.msra.mxu0 0.0
    %462 = vmatprep.subr.mxu0 0.0
    %463 = vmatpush1.msra.mxu0 0.0
    %464 = vmatprep.subr.mxu0 0.0
    %465 = vmatpush1.msra.mxu0 0.0
    %466 = vmatprep.subr.mxu0 0.0
    %467 = vmatpush1.msra.mxu0 0.0
    %468 = vmatprep.subr.mxu0 0.0
    %469 = vmatpush1.msra.mxu0 0.0
    %470 = vmatprep.subr.mxu0 0.0
    %471 = vmatpush1.msra.mxu0 0.0
    %472 = vmatprep.subr.mxu0 0.0
    %473 = vmatpush1.msra.mxu0 0.0
    %474 = vmatprep.subr.mxu0 0.0
    %475 = vmatpush1.msra.mxu0 %v113
    %476 = vmatprep.subr.mxu0 0.0
    %477 = vmatpush1.msra.mxu0 %v112
    %478 = vmatprep.subr.mxu0 0.0
    %479 = vmatpush1.msra.mxu0 %v111
    %480 = vmatprep.subr.mxu0 0.0
    %481 = vmatpush1.msra.mxu0 %v110
    %482 = vmatprep.subr.mxu0 0.0
    %483 = vmatpush2.msra.mxu0 0.0
    %484 = vmatprep.subr.mxu0 0.0
    %485 = vmatpush2.msra.mxu0 0.0
    %486 = vmatprep.subr.mxu0 0.0
    %487 = vmatpush2.msra.mxu0 0.0
    %488 = vmatprep.subr.mxu0 0.0
    %489 = vmatpush2.msra.mxu0 0.0
    %490 = vmatprep.subr.mxu0 0.0
    %491 = vmatpush2.msra.mxu0 0.0
    %492 = vmatprep.subr.mxu0 0.0
    %493 = vmatpush2.msra.mxu0 0.0
    %494 = vmatprep.subr.mxu0 0.0
    %495 = vmatpush2.msra.mxu0 0.0
    %496 = vmatprep.subr.mxu0 0.0
    %497 = vmatpush2.msra.mxu0 0.0
    %498 = vmatprep.subr.mxu0 0.0
    %499 = vmatpush2.msra.mxu0 0.0
    %500 = vmatprep.subr.mxu0 0.0
    %501 = vmatpush2.msra.mxu0 0.0
    %502 = vmatprep.subr.mxu0 0.0
    %503 = vmatpush2.msra.mxu0 0.0
    %504 = vmatprep.subr.mxu0 0.0
    %505 = vmatpush2.msra.mxu0 0.0
    %506 = vmatprep.subr.mxu0 0.0
    %507 = vmatpush2.msra.mxu0 0.0
    %508 = vmatprep.subr.mxu0 0.0
    %509 = vmatpush2.msra.mxu0 0.0
    %510 = vmatprep.subr.mxu0 0.0
    %511 = vmatpush2.msra.mxu0 0.0
    %512 = vmatprep.subr.mxu0 0.0
    %513 = vmatpush2.msra.mxu0 0.0
    %514 = vmatprep.mubr.f32.mxu0 0.0
    %515 = vmatmul.mubr.f32.gmra.mxu0 %v439
    %v516 = vpop.f32.mrf.mxu0
    %v517 = vadd.f32 0.0, %v516
    %v518 = vpop.f32.mrf.mxu0
    %519 = vmatprep.mubr.f32.mxu0 0.0
    %520 = vmatmul.mubr.f32.gmra.mxu0 %v442
    %v521 = vpop.f32.mrf.mxu0
    %v522 = vadd.f32 0.0, %v521
    %v523 = vpop.f32.mrf.mxu0
    %524 = vmatprep.mubr.f32.mxu0 0.0
    %525 = vmatmul.mubr.f32.gmra.mxu0 %v445
    %v526 = vpop.f32.mrf.mxu0
    %v527 = vadd.f32 0.0, %v526
    %v528 = vpop.f32.mrf.mxu0
    %529 = vmatprep.mubr.f32.mxu0 0.0
    %530 = vmatmul.mubr.f32.gmra.mxu0 %v448
    %v531 = vpop.f32.mrf.mxu0
    %v532 = vadd.f32 0.0, %v531
    %v533 = vpop.f32.mrf.mxu0
    %534 = vdwg.mxu0
    %539 = vrot.lane.b32.xlu0 %v323, 32
    %v540 = vpop.permute.xlu0 %539
    %541 = vrot.lane.b32.xlu0 %v328, 32
    %v542 = vpop.permute.xlu0 %541
    %543 = vrot.lane.b32.xlu0 %v333, 32
    %v544 = vpop.permute.xlu0 %543
    %545 = vrot.lane.b32.xlu0 %v338, 32
    %v546 = vpop.permute.xlu0 %545
    %555 = vrot.lane.b32.xlu0 %v420, 64
    %v556 = vpop.permute.xlu0 %555
    %557 = vrot.lane.b32.xlu0 %v425, 64
    %v558 = vpop.permute.xlu0 %557
    %559 = vrot.lane.b32.xlu0 %v430, 64
    %v560 = vpop.permute.xlu0 %559
    %561 = vrot.lane.b32.xlu0 %v435, 64
    %v562 = vpop.permute.xlu0 %561
    %571 = vrot.lane.b32.xlu0 %v517, 96
    %v572 = vpop.permute.xlu0 %571
    %573 = vrot.lane.b32.xlu0 %v522, 96
    %v574 = vpop.permute.xlu0 %573
    %575 = vrot.lane.b32.xlu0 %v527, 96
    %v576 = vpop.permute.xlu0 %575
    %577 = vrot.lane.b32.xlu0 %v532, 96
    %v578 = vpop.permute.xlu0 %577
    %v583 = vsel %vm146, %v226, %v540
    %v584 = vsel %vm146, %v231, %v542
    %v585 = vsel %vm146, %v236, %v544
    %v586 = vsel %vm146, %v241, %v546
    %vm587 = vcmask 523264
    %v588 = vsel %vm587, %v583, %v556
    %v589 = vsel %vm587, %v584, %v558
    %v590 = vsel %vm587, %v585, %v560
    %v591 = vsel %vm587, %v586, %v562
    %vm592 = vcmask 785408
    %v593 = vsel %vm592, %v588, %v572
    %v594 = vsel %vm592, %v589, %v574
    %v595 = vsel %vm592, %v590, %v576
    %v596 = vsel %vm592, %v591, %v578
    %v597 = vld [vmem:[%s2] sm:$0xff]
    %v598 = vld [vmem:[%s2 + $0x8] sm:$0xff]
    %v599 = vld [vmem:[%s2 + $0x10] sm:$0xff]
    %v600 = vld [vmem:[%s2 + $0x18] sm:$0xff]
    %v601 = vld [vmem:[%s2 + $0x20] sm:$0xff]
    %v602 = vld [vmem:[%s2 + $0x28] sm:$0xff]
    %v603 = vld [vmem:[%s2 + $0x30] sm:$0xff]
    %v604 = vld [vmem:[%s2 + $0x38] sm:$0xff]
    %v605 = vld [vmem:[%s2 + $0x40] sm:$0xff]
    %v606 = vld [vmem:[%s2 + $0x48] sm:$0xff]
    %v607 = vld [vmem:[%s2 + $0x50] sm:$0xff]
    %v608 = vld [vmem:[%s2 + $0x58] sm:$0xff]
    %v609 = vld [vmem:[%s2 + $0x60] sm:$0xff]
    %v610 = vld [vmem:[%s2 + $0x68] sm:$0xff]
    %v611 = vld [vmem:[%s2 + $0x70] sm:$0xff]
    %v612 = vld [vmem:[%s2 + $0x78] sm:$0xff]
    %v613 = vld [vmem:[%s2 + $0x80] sm:$0xff]
    %v614 = vld [vmem:[%s2 + $0x88] sm:$0xff]
    %v615 = vld [vmem:[%s2 + $0x90] sm:$0xff]
    %v616 = vld [vmem:[%s2 + $0x98] sm:$0xff]
    %v617 = vld [vmem:[%s6] sm:$0x1]
    %v619 = vlaneseq
    %v620 = vshrl.u32 %v619, 7
    %v621 = vsub.s32 0, %v620
    %v622 = vrot.slane %v617, %v621
    %v625 = vsel %vm146, %v110, 0
    %v628 = vsel %vm146, %v111, 0
    %v631 = vsel %vm146, %v112, 0
    %v634 = vsel %vm146, %v113, 0
    %636 = vmatprep.subr.mxu0 0.0
    %637 = vmatpush1.msra.mxu0 %v612
    %638 = vmatprep.subr.mxu0 0.0
    %639 = vmatpush1.msra.mxu0 %v611
    %640 = vmatprep.subr.mxu0 0.0
    %641 = vmatpush1.msra.mxu0 %v610
    %642 = vmatprep.subr.mxu0 0.0
    %643 = vmatpush1.msra.mxu0 %v609
    %644 = vmatprep.subr.mxu0 0.0
    %645 = vmatpush1.msra.mxu0 %v608
    %646 = vmatprep.subr.mxu0 0.0
    %647 = vmatpush1.msra.mxu0 %v607
    %648 = vmatprep.subr.mxu0 0.0
    %649 = vmatpush1.msra.mxu0 %v606
    %650 = vmatprep.subr.mxu0 0.0
    %651 = vmatpush1.msra.mxu0 %v605
    %652 = vmatprep.subr.mxu0 0.0
    %653 = vmatpush1.msra.mxu0 %v604
    %654 = vmatprep.subr.mxu0 0.0
    %655 = vmatpush1.msra.mxu0 %v603
    %656 = vmatprep.subr.mxu0 0.0
    %657 = vmatpush1.msra.mxu0 %v602
    %658 = vmatprep.subr.mxu0 0.0
    %659 = vmatpush1.msra.mxu0 %v601
    %660 = vmatprep.subr.mxu0 0.0
    %661 = vmatpush1.msra.mxu0 %v600
    %662 = vmatprep.subr.mxu0 0.0
    %663 = vmatpush1.msra.mxu0 %v599
    %664 = vmatprep.subr.mxu0 0.0
    %665 = vmatpush1.msra.mxu0 %v598
    %666 = vmatprep.subr.mxu0 0.0
    %667 = vmatpush1.msra.mxu0 %v597
    %668 = vmatprep.subr.mxu0 0.0
    %669 = vmatpush2.msra.mxu0 0.0
    %670 = vmatprep.subr.mxu0 0.0
    %671 = vmatpush2.msra.mxu0 0.0
    %672 = vmatprep.subr.mxu0 0.0
    %673 = vmatpush2.msra.mxu0 0.0
    %674 = vmatprep.subr.mxu0 0.0
    %675 = vmatpush2.msra.mxu0 0.0
    %676 = vmatprep.subr.mxu0 0.0
    %677 = vmatpush2.msra.mxu0 0.0
    %678 = vmatprep.subr.mxu0 0.0
    %679 = vmatpush2.msra.mxu0 0.0
    %680 = vmatprep.subr.mxu0 0.0
    %681 = vmatpush2.msra.mxu0 0.0
    %682 = vmatprep.subr.mxu0 0.0
    %683 = vmatpush2.msra.mxu0 0.0
    %684 = vmatprep.subr.mxu0 0.0
    %685 = vmatpush2.msra.mxu0 0.0
    %686 = vmatprep.subr.mxu0 0.0
    %687 = vmatpush2.msra.mxu0 0.0
    %688 = vmatprep.subr.mxu0 0.0
    %689 = vmatpush2.msra.mxu0 0.0
    %690 = vmatprep.subr.mxu0 0.0
    %691 = vmatpush2.msra.mxu0 0.0
    %692 = vmatprep.subr.mxu0 0.0
    %693 = vmatpush2.msra.mxu0 %v616
    %694 = vmatprep.subr.mxu0 0.0
    %695 = vmatpush2.msra.mxu0 %v615
    %696 = vmatprep.subr.mxu0 0.0
    %697 = vmatpush2.msra.mxu0 %v614
    %698 = vmatprep.subr.mxu0 0.0
    %699 = vmatpush2.msra.mxu0 %v613
    %700 = vmatprep.mubr.f32.mxu0 %v625
    %701 = vmatmul.mubr.f32.gmra.mxu0 %v593
    %v702 = vpop.f32.mrf.mxu0
    %v703 = vadd.f32 %v622, %v702
    %v704 = vpop.f32.mrf.mxu0
    %705 = vmatprep.mubr.f32.mxu0 %v628
    %706 = vmatmul.mubr.f32.gmra.mxu0 %v594
    %v707 = vpop.f32.mrf.mxu0
    %v708 = vadd.f32 %v622, %v707
    %v709 = vpop.f32.mrf.mxu0
    %710 = vmatprep.mubr.f32.mxu0 %v631
    %711 = vmatmul.mubr.f32.gmra.mxu0 %v595
    %v712 = vpop.f32.mrf.mxu0
    %v713 = vadd.f32 %v622, %v712
    %v714 = vpop.f32.mrf.mxu0
    %715 = vmatprep.mubr.f32.mxu0 %v634
    %716 = vmatmul.mubr.f32.gmra.mxu0 %v596
    %v717 = vpop.f32.mrf.mxu0
    %v718 = vadd.f32 %v622, %v717
    %v719 = vpop.f32.mrf.mxu0
    %720 = vdwg.mxu0
    %v721 = vmax.f32 %v703, 0.0
    %v722 = vmax.f32 %v708, 0.0
    %v723 = vmax.f32 %v713, 0.0
    %v724 = vmax.f32 %v718, 0.0
    %725 = vmatprep.subr.mxu0 0.0
    %726 = vmatpush1.msra.mxu0 0.0
    %727 = vmatprep.subr.mxu0 0.0
    %728 = vmatpush1.msra.mxu0 0.0
    %729 = vmatprep.subr.mxu0 0.0
    %730 = vmatpush1.msra.mxu0 0.0
    %731 = vmatprep.subr.mxu0 0.0
    %732 = vmatpush1.msra.mxu0 0.0
    %733 = vmatprep.subr.mxu0 0.0
    %734 = vmatpush1.msra.mxu0 0.0
    %735 = vmatprep.subr.mxu0 0.0
    %736 = vmatpush1.msra.mxu0 0.0
    %737 = vmatprep.subr.mxu0 0.0
    %738 = vmatpush1.msra.mxu0 0.0
    %739 = vmatprep.subr.mxu0 0.0
    %740 = vmatpush1.msra.mxu0 0.0
    %741 = vmatprep.subr.mxu0 0.0
    %742 = vmatpush1.msra.mxu0 0.0
    %743 = vmatprep.subr.mxu0 0.0
    %744 = vmatpush1.msra.mxu0 0.0
    %745 = vmatprep.subr.mxu0 0.0
    %746 = vmatpush1.msra.mxu0 0.0
    %747 = vmatprep.subr.mxu0 0.0
    %748 = vmatpush1.msra.mxu0 0.0
    %749 = vmatprep.subr.mxu0 0.0
    %750 = vmatpush1.msra.mxu0 %v724
    %751 = vmatprep.subr.mxu0 0.0
    %752 = vmatpush1.msra.mxu0 %v723
    %753 = vmatprep.subr.mxu0 0.0
    %754 = vmatpush1.msra.mxu0 %v722
    %755 = vmatprep.subr.mxu0 0.0
    %756 = vmatpush1.msra.mxu0 %v721
    %757 = vmatprep.subr.mxu0 0.0
    %758 = vmatpush2.msra.mxu0 0.0
    %759 = vmatprep.subr.mxu0 0.0
    %760 = vmatpush2.msra.mxu0 0.0
    %761 = vmatprep.subr.mxu0 0.0
    %762 = vmatpush2.msra.mxu0 0.0
    %763 = vmatprep.subr.mxu0 0.0
    %764 = vmatpush2.msra.mxu0 0.0
    %765 = vmatprep.subr.mxu0 0.0
    %766 = vmatpush2.msra.mxu0 0.0
    %767 = vmatprep.subr.mxu0 0.0
    %768 = vmatpush2.msra.mxu0 0.0
    %769 = vmatprep.subr.mxu0 0.0
    %770 = vmatpush2.msra.mxu0 0.0
    %771 = vmatprep.subr.mxu0 0.0
    %772 = vmatpush2.msra.mxu0 0.0
    %773 = vmatprep.subr.mxu0 0.0
    %774 = vmatpush2.msra.mxu0 0.0
    %775 = vmatprep.subr.mxu0 0.0
    %776 = vmatpush2.msra.mxu0 0.0
    %777 = vmatprep.subr.mxu0 0.0
    %778 = vmatpush2.msra.mxu0 0.0
    %779 = vmatprep.subr.mxu0 0.0
    %780 = vmatpush2.msra.mxu0 0.0
    %781 = vmatprep.subr.mxu0 0.0
    %782 = vmatpush2.msra.mxu0 0.0
    %783 = vmatprep.subr.mxu0 0.0
    %784 = vmatpush2.msra.mxu0 0.0
    %785 = vmatprep.subr.mxu0 0.0
    %786 = vmatpush2.msra.mxu0 0.0
    %787 = vmatprep.subr.mxu0 0.0
    %788 = vmatpush2.msra.mxu0 0.0
    %789 = vmatprep.mubr.f32.mxu0 0.0
    %790 = vmatmul.mubr.f32.gmra.mxu0 %v148
    %v791 = vpop.f32.mrf.mxu0
    %v792 = vadd.f32 0.0, %v791
    %v793 = vpop.f32.mrf.mxu0
    %794 = vmatprep.mubr.f32.mxu0 0.0
    %795 = vmatmul.mubr.f32.gmra.mxu0 %v151
    %v796 = vpop.f32.mrf.mxu0
    %v797 = vadd.f32 0.0, %v796
    %v798 = vpop.f32.mrf.mxu0
    %799 = vmatprep.mubr.f32.mxu0 0.0
    %800 = vmatmul.mubr.f32.gmra.mxu0 %v154
    %v801 = vpop.f32.mrf.mxu0
    %v802 = vadd.f32 0.0, %v801
    %v803 = vpop.f32.mrf.mxu0
    %804 = vmatprep.mubr.f32.mxu0 0.0
    %805 = vmatmul.mubr.f32.gmra.mxu0 %v157
    %v806 = vpop.f32.mrf.mxu0
    %v807 = vadd.f32 0.0, %v806
    %v808 = vpop.f32.mrf.mxu0
    %809 = vdwg.mxu0
    %810 = vmatprep.subr.mxu0 0.0
    %811 = vmatpush1.msra.mxu0 0.0
    %812 = vmatprep.subr.mxu0 0.0
    %813 = vmatpush1.msra.mxu0 0.0
    %814 = vmatprep.subr.mxu0 0.0
    %815 = vmatpush1.msra.mxu0 0.0
    %816 = vmatprep.subr.mxu0 0.0
    %817 = vmatpush1.msra.mxu0 0.0
    %818 = vmatprep.subr.mxu0 0.0
    %819 = vmatpush1.msra.mxu0 0.0
    %820 = vmatprep.subr.mxu0 0.0
    %821 = vmatpush1.msra.mxu0 0.0
    %822 = vmatprep.subr.mxu0 0.0
    %823 = vmatpush1.msra.mxu0 0.0
    %824 = vmatprep.subr.mxu0 0.0
    %825 = vmatpush1.msra.mxu0 0.0
    %826 = vmatprep.subr.mxu0 0.0
    %827 = vmatpush1.msra.mxu0 0.0
    %828 = vmatprep.subr.mxu0 0.0
    %829 = vmatpush1.msra.mxu0 0.0
    %830 = vmatprep.subr.mxu0 0.0
    %831 = vmatpush1.msra.mxu0 0.0
    %832 = vmatprep.subr.mxu0 0.0
    %833 = vmatpush1.msra.mxu0 0.0
    %834 = vmatprep.subr.mxu0 0.0
    %835 = vmatpush1.msra.mxu0 %v724
    %836 = vmatprep.subr.mxu0 0.0
    %837 = vmatpush1.msra.mxu0 %v723
    %838 = vmatprep.subr.mxu0 0.0
    %839 = vmatpush1.msra.mxu0 %v722
    %840 = vmatprep.subr.mxu0 0.0
    %841 = vmatpush1.msra.mxu0 %v721
    %842 = vmatprep.subr.mxu0 0.0
    %843 = vmatpush2.msra.mxu0 0.0
    %844 = vmatprep.subr.mxu0 0.0
    %845 = vmatpush2.msra.mxu0 0.0
    %846 = vmatprep.subr.mxu0 0.0
    %847 = vmatpush2.msra.mxu0 0.0
    %848 = vmatprep.subr.mxu0 0.0
    %849 = vmatpush2.msra.mxu0 0.0
    %850 = vmatprep.subr.mxu0 0.0
    %851 = vmatpush2.msra.mxu0 0.0
    %852 = vmatprep.subr.mxu0 0.0
    %853 = vmatpush2.msra.mxu0 0.0
    %854 = vmatprep.subr.mxu0 0.0
    %855 = vmatpush2.msra.mxu0 0.0
    %856 = vmatprep.subr.mxu0 0.0
    %857 = vmatpush2.msra.mxu0 0.0
    %858 = vmatprep.subr.mxu0 0.0
    %859 = vmatpush2.msra.mxu0 0.0
    %860 = vmatprep.subr.mxu0 0.0
    %861 = vmatpush2.msra.mxu0 0.0
    %862 = vmatprep.subr.mxu0 0.0
    %863 = vmatpush2.msra.mxu0 0.0
    %864 = vmatprep.subr.mxu0 0.0
    %865 = vmatpush2.msra.mxu0 0.0
    %866 = vmatprep.subr.mxu0 0.0
    %867 = vmatpush2.msra.mxu0 0.0
    %868 = vmatprep.subr.mxu0 0.0
    %869 = vmatpush2.msra.mxu0 0.0
    %870 = vmatprep.subr.mxu0 0.0
    %871 = vmatpush2.msra.mxu0 0.0
    %872 = vmatprep.subr.mxu0 0.0
    %873 = vmatpush2.msra.mxu0 0.0
    %874 = vmatprep.mubr.f32.mxu0 0.0
    %875 = vmatmul.mubr.f32.gmra.mxu0 %v245
    %v876 = vpop.f32.mrf.mxu0
    %v877 = vadd.f32 0.0, %v876
    %v878 = vpop.f32.mrf.mxu0
    %879 = vmatprep.mubr.f32.mxu0 0.0
    %880 = vmatmul.mubr.f32.gmra.mxu0 %v248
    %v881 = vpop.f32.mrf.mxu0
    %v882 = vadd.f32 0.0, %v881
    %v883 = vpop.f32.mrf.mxu0
    %884 = vmatprep.mubr.f32.mxu0 0.0
    %885 = vmatmul.mubr.f32.gmra.mxu0 %v251
    %v886 = vpop.f32.mrf.mxu0
    %v887 = vadd.f32 0.0, %v886
    %v888 = vpop.f32.mrf.mxu0
    %889 = vmatprep.mubr.f32.mxu0 0.0
    %890 = vmatmul.mubr.f32.gmra.mxu0 %v254
    %v891 = vpop.f32.mrf.mxu0
    %v892 = vadd.f32 0.0, %v891
    %v893 = vpop.f32.mrf.mxu0
    %894 = vdwg.mxu0
    %895 = vmatprep.subr.mxu0 0.0
    %896 = vmatpush1.msra.mxu0 0.0
    %897 = vmatprep.subr.mxu0 0.0
    %898 = vmatpush1.msra.mxu0 0.0
    %899 = vmatprep.subr.mxu0 0.0
    %900 = vmatpush1.msra.mxu0 0.0
    %901 = vmatprep.subr.mxu0 0.0
    %902 = vmatpush1.msra.mxu0 0.0
    %903 = vmatprep.subr.mxu0 0.0
    %904 = vmatpush1.msra.mxu0 0.0
    %905 = vmatprep.subr.mxu0 0.0
    %906 = vmatpush1.msra.mxu0 0.0
    %907 = vmatprep.subr.mxu0 0.0
    %908 = vmatpush1.msra.mxu0 0.0
    %909 = vmatprep.subr.mxu0 0.0
    %910 = vmatpush1.msra.mxu0 0.0
    %911 = vmatprep.subr.mxu0 0.0
    %912 = vmatpush1.msra.mxu0 0.0
    %913 = vmatprep.subr.mxu0 0.0
    %914 = vmatpush1.msra.mxu0 0.0
    %915 = vmatprep.subr.mxu0 0.0
    %916 = vmatpush1.msra.mxu0 0.0
    %917 = vmatprep.subr.mxu0 0.0
    %918 = vmatpush1.msra.mxu0 0.0
    %919 = vmatprep.subr.mxu0 0.0
    %920 = vmatpush1.msra.mxu0 %v724
    %921 = vmatprep.subr.mxu0 0.0
    %922 = vmatpush1.msra.mxu0 %v723
    %923 = vmatprep.subr.mxu0 0.0
    %924 = vmatpush1.msra.mxu0 %v722
    %925 = vmatprep.subr.mxu0 0.0
    %926 = vmatpush1.msra.mxu0 %v721
    %927 = vmatprep.subr.mxu0 0.0
    %928 = vmatpush2.msra.mxu0 0.0
    %929 = vmatprep.subr.mxu0 0.0
    %930 = vmatpush2.msra.mxu0 0.0
    %931 = vmatprep.subr.mxu0 0.0
    %932 = vmatpush2.msra.mxu0 0.0
    %933 = vmatprep.subr.mxu0 0.0
    %934 = vmatpush2.msra.mxu0 0.0
    %935 = vmatprep.subr.mxu0 0.0
    %936 = vmatpush2.msra.mxu0 0.0
    %937 = vmatprep.subr.mxu0 0.0
    %938 = vmatpush2.msra.mxu0 0.0
    %939 = vmatprep.subr.mxu0 0.0
    %940 = vmatpush2.msra.mxu0 0.0
    %941 = vmatprep.subr.mxu0 0.0
    %942 = vmatpush2.msra.mxu0 0.0
    %943 = vmatprep.subr.mxu0 0.0
    %944 = vmatpush2.msra.mxu0 0.0
    %945 = vmatprep.subr.mxu0 0.0
    %946 = vmatpush2.msra.mxu0 0.0
    %947 = vmatprep.subr.mxu0 0.0
    %948 = vmatpush2.msra.mxu0 0.0
    %949 = vmatprep.subr.mxu0 0.0
    %950 = vmatpush2.msra.mxu0 0.0
    %951 = vmatprep.subr.mxu0 0.0
    %952 = vmatpush2.msra.mxu0 0.0
    %953 = vmatprep.subr.mxu0 0.0
    %954 = vmatpush2.msra.mxu0 0.0
    %955 = vmatprep.subr.mxu0 0.0
    %956 = vmatpush2.msra.mxu0 0.0
    %957 = vmatprep.subr.mxu0 0.0
    %958 = vmatpush2.msra.mxu0 0.0
    %959 = vmatprep.mubr.f32.mxu0 0.0
    %960 = vmatmul.mubr.f32.gmra.mxu0 %v342
    %v961 = vpop.f32.mrf.mxu0
    %v962 = vadd.f32 0.0, %v961
    %v963 = vpop.f32.mrf.mxu0
    %964 = vmatprep.mubr.f32.mxu0 0.0
    %965 = vmatmul.mubr.f32.gmra.mxu0 %v345
    %v966 = vpop.f32.mrf.mxu0
    %v967 = vadd.f32 0.0, %v966
    %v968 = vpop.f32.mrf.mxu0
    %969 = vmatprep.mubr.f32.mxu0 0.0
    %970 = vmatmul.mubr.f32.gmra.mxu0 %v348
    %v971 = vpop.f32.mrf.mxu0
    %v972 = vadd.f32 0.0, %v971
    %v973 = vpop.f32.mrf.mxu0
    %974 = vmatprep.mubr.f32.mxu0 0.0
    %975 = vmatmul.mubr.f32.gmra.mxu0 %v351
    %v976 = vpop.f32.mrf.mxu0
    %v977 = vadd.f32 0.0, %v976
    %v978 = vpop.f32.mrf.mxu0
    %979 = vdwg.mxu0
    %980 = vmatprep.subr.mxu0 0.0
    %981 = vmatpush1.msra.mxu0 0.0
    %982 = vmatprep.subr.mxu0 0.0
    %983 = vmatpush1.msra.mxu0 0.0
    %984 = vmatprep.subr.mxu0 0.0
    %985 = vmatpush1.msra.mxu0 0.0
    %986 = vmatprep.subr.mxu0 0.0
    %987 = vmatpush1.msra.mxu0 0.0
    %988 = vmatprep.subr.mxu0 0.0
    %989 = vmatpush1.msra.mxu0 0.0
    %990 = vmatprep.subr.mxu0 0.0
    %991 = vmatpush1.msra.mxu0 0.0
    %992 = vmatprep.subr.mxu0 0.0
    %993 = vmatpush1.msra.mxu0 0.0
    %994 = vmatprep.subr.mxu0 0.0
    %995 = vmatpush1.msra.mxu0 0.0
    %996 = vmatprep.subr.mxu0 0.0
    %997 = vmatpush1.msra.mxu0 0.0
    %998 = vmatprep.subr.mxu0 0.0
    %999 = vmatpush1.msra.mxu0 0.0
    %1000 = vmatprep.subr.mxu0 0.0
    %1001 = vmatpush1.msra.mxu0 0.0
    %1002 = vmatprep.subr.mxu0 0.0
    %1003 = vmatpush1.msra.mxu0 0.0
    %1004 = vmatprep.subr.mxu0 0.0
    %1005 = vmatpush1.msra.mxu0 %v724
    %1006 = vmatprep.subr.mxu0 0.0
    %1007 = vmatpush1.msra.mxu0 %v723
    %1008 = vmatprep.subr.mxu0 0.0
    %1009 = vmatpush1.msra.mxu0 %v722
    %1010 = vmatprep.subr.mxu0 0.0
    %1011 = vmatpush1.msra.mxu0 %v721
    %1012 = vmatprep.subr.mxu0 0.0
    %1013 = vmatpush2.msra.mxu0 0.0
    %1014 = vmatprep.subr.mxu0 0.0
    %1015 = vmatpush2.msra.mxu0 0.0
    %1016 = vmatprep.subr.mxu0 0.0
    %1017 = vmatpush2.msra.mxu0 0.0
    %1018 = vmatprep.subr.mxu0 0.0
    %1019 = vmatpush2.msra.mxu0 0.0
    %1020 = vmatprep.subr.mxu0 0.0
    %1021 = vmatpush2.msra.mxu0 0.0
    %1022 = vmatprep.subr.mxu0 0.0
    %1023 = vmatpush2.msra.mxu0 0.0
    %1024 = vmatprep.subr.mxu0 0.0
    %1025 = vmatpush2.msra.mxu0 0.0
    %1026 = vmatprep.subr.mxu0 0.0
    %1027 = vmatpush2.msra.mxu0 0.0
    %1028 = vmatprep.subr.mxu0 0.0
    %1029 = vmatpush2.msra.mxu0 0.0
    %1030 = vmatprep.subr.mxu0 0.0
    %1031 = vmatpush2.msra.mxu0 0.0
    %1032 = vmatprep.subr.mxu0 0.0
    %1033 = vmatpush2.msra.mxu0 0.0
    %1034 = vmatprep.subr.mxu0 0.0
    %1035 = vmatpush2.msra.mxu0 0.0
    %1036 = vmatprep.subr.mxu0 0.0
    %1037 = vmatpush2.msra.mxu0 0.0
    %1038 = vmatprep.subr.mxu0 0.0
    %1039 = vmatpush2.msra.mxu0 0.0
    %1040 = vmatprep.subr.mxu0 0.0
    %1041 = vmatpush2.msra.mxu0 0.0
    %1042 = vmatprep.subr.mxu0 0.0
    %1043 = vmatpush2.msra.mxu0 0.0
    %1044 = vmatprep.mubr.f32.mxu0 0.0
    %1045 = vmatmul.mubr.f32.gmra.mxu0 %v439
    %v1046 = vpop.f32.mrf.mxu0
    %v1047 = vadd.f32 0.0, %v1046
    %v1048 = vpop.f32.mrf.mxu0
    %1049 = vmatprep.mubr.f32.mxu0 0.0
    %1050 = vmatmul.mubr.f32.gmra.mxu0 %v442
    %v1051 = vpop.f32.mrf.mxu0
    %v1052 = vadd.f32 0.0, %v1051
    %v1053 = vpop.f32.mrf.mxu0
    %1054 = vmatprep.mubr.f32.mxu0 0.0
    %1055 = vmatmul.mubr.f32.gmra.mxu0 %v445
    %v1056 = vpop.f32.mrf.mxu0
    %v1057 = vadd.f32 0.0, %v1056
    %v1058 = vpop.f32.mrf.mxu0
    %1059 = vmatprep.mubr.f32.mxu0 0.0
    %1060 = vmatmul.mubr.f32.gmra.mxu0 %v448
    %v1061 = vpop.f32.mrf.mxu0
    %v1062 = vadd.f32 0.0, %v1061
    %v1063 = vpop.f32.mrf.mxu0
    %1064 = vdwg.mxu0
    %1069 = vrot.lane.b32.xlu0 %v877, 32
    %v1070 = vpop.permute.xlu0 %1069
    %1071 = vrot.lane.b32.xlu0 %v882, 32
    %v1072 = vpop.permute.xlu0 %1071
    %1073 = vrot.lane.b32.xlu0 %v887, 32
    %v1074 = vpop.permute.xlu0 %1073
    %1075 = vrot.lane.b32.xlu0 %v892, 32
    %v1076 = vpop.permute.xlu0 %1075
    %1085 = vrot.lane.b32.xlu0 %v962, 64
    %v1086 = vpop.permute.xlu0 %1085
    %1087 = vrot.lane.b32.xlu0 %v967, 64
    %v1088 = vpop.permute.xlu0 %1087
    %1089 = vrot.lane.b32.xlu0 %v972, 64
    %v1090 = vpop.permute.xlu0 %1089
    %1091 = vrot.lane.b32.xlu0 %v977, 64
    %v1092 = vpop.permute.xlu0 %1091
    %1101 = vrot.lane.b32.xlu0 %v1047, 96
    %v1102 = vpop.permute.xlu0 %1101
    %1103 = vrot.lane.b32.xlu0 %v1052, 96
    %v1104 = vpop.permute.xlu0 %1103
    %1105 = vrot.lane.b32.xlu0 %v1057, 96
    %v1106 = vpop.permute.xlu0 %1105
    %1107 = vrot.lane.b32.xlu0 %v1062, 96
    %v1108 = vpop.permute.xlu0 %1107
    %v1113 = vsel %vm146, %v792, %v1070
    %v1114 = vsel %vm146, %v797, %v1072
    %v1115 = vsel %vm146, %v802, %v1074
    %v1116 = vsel %vm146, %v807, %v1076
    %v1117 = vsel %vm587, %v1113, %v1086
    %v1118 = vsel %vm587, %v1114, %v1088
    %v1119 = vsel %vm587, %v1115, %v1090
    %v1120 = vsel %vm587, %v1116, %v1092
    %v1121 = vsel %vm592, %v1117, %v1102
    %v1122 = vsel %vm592, %v1118, %v1104
    %v1123 = vsel %vm592, %v1119, %v1106
    %v1124 = vsel %vm592, %v1120, %v1108
    %v1125 = vld [vmem:[%s3] sm:$0xff]
    %v1126 = vld [vmem:[%s3 + $0x8] sm:$0xff]
    %v1127 = vld [vmem:[%s3 + $0x10] sm:$0xff]
    %v1128 = vld [vmem:[%s3 + $0x18] sm:$0xff]
    %v1129 = vld [vmem:[%s3 + $0x20] sm:$0xff]
    %v1130 = vld [vmem:[%s3 + $0x28] sm:$0xff]
    %v1131 = vld [vmem:[%s3 + $0x30] sm:$0xff]
    %v1132 = vld [vmem:[%s3 + $0x38] sm:$0xff]
    %v1133 = vld [vmem:[%s3 + $0x40] sm:$0xff]
    %v1134 = vld [vmem:[%s3 + $0x48] sm:$0xff]
    %v1135 = vld [vmem:[%s3 + $0x50] sm:$0xff]
    %v1136 = vld [vmem:[%s3 + $0x58] sm:$0xff]
    %v1137 = vld [vmem:[%s3 + $0x60] sm:$0xff]
    %v1138 = vld [vmem:[%s3 + $0x68] sm:$0xff]
    %v1139 = vld [vmem:[%s3 + $0x70] sm:$0xff]
    %v1140 = vld [vmem:[%s3 + $0x78] sm:$0xff]
    %v1141 = vld [vmem:[%s3 + $0x80] sm:$0xff]
    %v1142 = vld [vmem:[%s3 + $0x88] sm:$0xff]
    %v1143 = vld [vmem:[%s3 + $0x90] sm:$0xff]
    %v1144 = vld [vmem:[%s3 + $0x98] sm:$0xff]
    %v1145 = vld [vmem:[%s7] sm:$0x1]
    %v1147 = vlaneseq
    %v1148 = vshrl.u32 %v1147, 7
    %v1149 = vsub.s32 0, %v1148
    %v1150 = vrot.slane %v1145, %v1149
    %v1153 = vsel %vm146, %v721, 0
    %v1156 = vsel %vm146, %v722, 0
    %v1159 = vsel %vm146, %v723, 0
    %v1162 = vsel %vm146, %v724, 0
    %1164 = vmatprep.subr.mxu0 0.0
    %1165 = vmatpush1.msra.mxu0 %v1140
    %1166 = vmatprep.subr.mxu0 0.0
    %1167 = vmatpush1.msra.mxu0 %v1139
    %1168 = vmatprep.subr.mxu0 0.0
    %1169 = vmatpush1.msra.mxu0 %v1138
    %1170 = vmatprep.subr.mxu0 0.0
    %1171 = vmatpush1.msra.mxu0 %v1137
    %1172 = vmatprep.subr.mxu0 0.0
    %1173 = vmatpush1.msra.mxu0 %v1136
    %1174 = vmatprep.subr.mxu0 0.0
    %1175 = vmatpush1.msra.mxu0 %v1135
    %1176 = vmatprep.subr.mxu0 0.0
    %1177 = vmatpush1.msra.mxu0 %v1134
    %1178 = vmatprep.subr.mxu0 0.0
    %1179 = vmatpush1.msra.mxu0 %v1133
    %1180 = vmatprep.subr.mxu0 0.0
    %1181 = vmatpush1.msra.mxu0 %v1132
    %1182 = vmatprep.subr.mxu0 0.0
    %1183 = vmatpush1.msra.mxu0 %v1131
    %1184 = vmatprep.subr.mxu0 0.0
    %1185 = vmatpush1.msra.mxu0 %v1130
    %1186 = vmatprep.subr.mxu0 0.0
    %1187 = vmatpush1.msra.mxu0 %v1129
    %1188 = vmatprep.subr.mxu0 0.0
    %1189 = vmatpush1.msra.mxu0 %v1128
    %1190 = vmatprep.subr.mxu0 0.0
    %1191 = vmatpush1.msra.mxu0 %v1127
    %1192 = vmatprep.subr.mxu0 0.0
    %1193 = vmatpush1.msra.mxu0 %v1126
    %1194 = vmatprep.subr.mxu0 0.0
    %1195 = vmatpush1.msra.mxu0 %v1125
    %1196 = vmatprep.subr.mxu0 0.0
    %1197 = vmatpush2.msra.mxu0 0.0
    %1198 = vmatprep.subr.mxu0 0.0
    %1199 = vmatpush2.msra.mxu0 0.0
    %1200 = vmatprep.subr.mxu0 0.0
    %1201 = vmatpush2.msra.mxu0 0.0
    %1202 = vmatprep.subr.mxu0 0.0
    %1203 = vmatpush2.msra.mxu0 0.0
    %1204 = vmatprep.subr.mxu0 0.0
    %1205 = vmatpush2.msra.mxu0 0.0
    %1206 = vmatprep.subr.mxu0 0.0
    %1207 = vmatpush2.msra.mxu0 0.0
    %1208 = vmatprep.subr.mxu0 0.0
    %1209 = vmatpush2.msra.mxu0 0.0
    %1210 = vmatprep.subr.mxu0 0.0
    %1211 = vmatpush2.msra.mxu0 0.0
    %1212 = vmatprep.subr.mxu0 0.0
    %1213 = vmatpush2.msra.mxu0 0.0
    %1214 = vmatprep.subr.mxu0 0.0
    %1215 = vmatpush2.msra.mxu0 0.0
    %1216 = vmatprep.subr.mxu0 0.0
    %1217 = vmatpush2.msra.mxu0 0.0
    %1218 = vmatprep.subr.mxu0 0.0
    %1219 = vmatpush2.msra.mxu0 0.0
    %1220 = vmatprep.subr.mxu0 0.0
    %1221 = vmatpush2.msra.mxu0 %v1144
    %1222 = vmatprep.subr.mxu0 0.0
    %1223 = vmatpush2.msra.mxu0 %v1143
    %1224 = vmatprep.subr.mxu0 0.0
    %1225 = vmatpush2.msra.mxu0 %v1142
    %1226 = vmatprep.subr.mxu0 0.0
    %1227 = vmatpush2.msra.mxu0 %v1141
    %1228 = vmatprep.mubr.f32.mxu0 %v1153
    %1229 = vmatmul.mubr.f32.gmra.mxu0 %v1121
    %v1230 = vpop.f32.mrf.mxu0
    %v1231 = vadd.f32 %v1150, %v1230
    %v1232 = vpop.f32.mrf.mxu0
    %1233 = vmatprep.mubr.f32.mxu0 %v1156
    %1234 = vmatmul.mubr.f32.gmra.mxu0 %v1122
    %v1235 = vpop.f32.mrf.mxu0
    %v1236 = vadd.f32 %v1150, %v1235
    %v1237 = vpop.f32.mrf.mxu0
    %1238 = vmatprep.mubr.f32.mxu0 %v1159
    %1239 = vmatmul.mubr.f32.gmra.mxu0 %v1123
    %v1240 = vpop.f32.mrf.mxu0
    %v1241 = vadd.f32 %v1150, %v1240
    %v1242 = vpop.f32.mrf.mxu0
    %1243 = vmatprep.mubr.f32.mxu0 %v1162
    %1244 = vmatmul.mubr.f32.gmra.mxu0 %v1124
    %v1245 = vpop.f32.mrf.mxu0
    %v1246 = vadd.f32 %v1150, %v1245
    %v1247 = vpop.f32.mrf.mxu0
    %1248 = vdwg.mxu0
    %v1249 = vld [vmem:[%s8] sm:$0xff]
    %v1250 = vld [vmem:[%s8 + $0x8] sm:$0xff]
    %v1251 = vld [vmem:[%s8 + $0x10] sm:$0xff]
    %v1252 = vld [vmem:[%s8 + $0x18] sm:$0xff]
    %v1253 = vmul.f32 %v1231, %v1249
    %v1254 = vmul.f32 %v1236, %v1250
    %v1255 = vmul.f32 %v1241, %v1251
    %v1256 = vmul.f32 %v1246, %v1252
    %v1257 = vld [vmem:[%s9] sm:$0x3]
    %v1259 = vsel %vm146, %v1257, 0
    %1261 = vmatprep.subr.mxu0 0.0
    %1262 = vmatpush1.msra.mxu0 0.0
    %1263 = vmatprep.subr.mxu0 0.0
    %1264 = vmatpush1.msra.mxu0 0.0
    %1265 = vmatprep.subr.mxu0 0.0
    %1266 = vmatpush1.msra.mxu0 0.0
    %1267 = vmatprep.subr.mxu0 0.0
    %1268 = vmatpush1.msra.mxu0 0.0
    %1269 = vmatprep.subr.mxu0 0.0
    %1270 = vmatpush1.msra.mxu0 0.0
    %1271 = vmatprep.subr.mxu0 0.0
    %1272 = vmatpush1.msra.mxu0 0.0
    %1273 = vmatprep.subr.mxu0 0.0
    %1274 = vmatpush1.msra.mxu0 0.0
    %1275 = vmatprep.subr.mxu0 0.0
    %1276 = vmatpush1.msra.mxu0 0.0
    %1277 = vmatprep.subr.mxu0 0.0
    %1278 = vmatpush1.msra.mxu0 0.0
    %1279 = vmatprep.subr.mxu0 0.0
    %1280 = vmatpush1.msra.mxu0 0.0
    %1281 = vmatprep.subr.mxu0 0.0
    %1282 = vmatpush1.msra.mxu0 0.0
    %1283 = vmatprep.subr.mxu0 0.0
    %1284 = vmatpush1.msra.mxu0 0.0
    %1285 = vmatprep.subr.mxu0 0.0
    %1286 = vmatpush1.msra.mxu0 %v1256
    %1287 = vmatprep.subr.mxu0 0.0
    %1288 = vmatpush1.msra.mxu0 %v1255
    %1289 = vmatprep.subr.mxu0 0.0
    %1290 = vmatpush1.msra.mxu0 %v1254
    %1291 = vmatprep.subr.mxu0 0.0
    %1292 = vmatpush1.msra.mxu0 %v1253
    %1293 = vmatprep.subr.mxu0 0.0
    %1294 = vmatpush2.msra.mxu0 0.0
    %1295 = vmatprep.subr.mxu0 0.0
    %1296 = vmatpush2.msra.mxu0 0.0
    %1297 = vmatprep.subr.mxu0 0.0
    %1298 = vmatpush2.msra.mxu0 0.0
    %1299 = vmatprep.subr.mxu0 0.0
    %1300 = vmatpush2.msra.mxu0 0.0
    %1301 = vmatprep.subr.mxu0 0.0
    %1302 = vmatpush2.msra.mxu0 0.0
    %1303 = vmatprep.subr.mxu0 0.0
    %1304 = vmatpush2.msra.mxu0 0.0
    %1305 = vmatprep.subr.mxu0 0.0
    %1306 = vmatpush2.msra.mxu0 0.0
    %1307 = vmatprep.subr.mxu0 0.0
    %1308 = vmatpush2.msra.mxu0 0.0
    %1309 = vmatprep.subr.mxu0 0.0
    %1310 = vmatpush2.msra.mxu0 0.0
    %1311 = vmatprep.subr.mxu0 0.0
    %1312 = vmatpush2.msra.mxu0 0.0
    %1313 = vmatprep.subr.mxu0 0.0
    %1314 = vmatpush2.msra.mxu0 0.0
    %1315 = vmatprep.subr.mxu0 0.0
    %1316 = vmatpush2.msra.mxu0 0.0
    %1317 = vmatprep.subr.mxu0 0.0
    %1318 = vmatpush2.msra.mxu0 0.0
    %1319 = vmatprep.subr.mxu0 0.0
    %1320 = vmatpush2.msra.mxu0 0.0
    %1321 = vmatprep.subr.mxu0 0.0
    %1322 = vmatpush2.msra.mxu0 0.0
    %1323 = vmatprep.subr.mxu0 0.0
    %1324 = vmatpush2.msra.mxu0 0.0
    %1325 = vmatprep.mubr.f32.mxu0 0.0
    %1326 = vmatmul.mubr.f32.gmra.mxu0 %v1259
    %v1327 = vpop.f32.mrf.mxu0
    %v1328 = vadd.f32 0.0, %v1327
    %v1329 = vpop.f32.mrf.mxu0
    %1330 = vdwg.mxu0
    %vm1331 = vcmask 254976
    %v1332 = vsel %vm1331, %v1328, 0.0
    %1333 = vadd.xlane.f32.xlu0 %v1332
    %v1334 = vpop.xlane.xlu0 %1333
    %v1335 = vld [vmem:[#allocation2] sm:$0x1]
    %v1337 = vlaneseq
    %v1338 = vshrl.u32 %v1337, 7
    %v1339 = vsub.s32 0, %v1338
    %v1340 = vrot.slane %v1335, %v1339
    %v1342 = vadd.f32 %v1334, %v1340
    %v1343 = vsub.f32 0.0, %v1342
    %v1344 = vmul.f32 %v1343, 1.442695
    %v1345 = vpow.pop %v1344
    %v1346 = vadd.f32 %v1345, 1.0
    %v1347 = vrcp.pop %v1346
    %v1348 = vmul.f32 1.0, %v1347
    %1350 = vset.pattern.permute.xlu0 0
    %1351 = vperm.xlu0 %1350, %v1348
    %v1352 = vpop.permute.xlu0 %1351
    %1354 = vst [vmem:[#allocation3] sm:$0x3] %v1352
    // Predicated region
    $region46: #{tpu_custom_call.1} parent=1 // pred_check
      _
    $region47: #{tpu_custom_call.1} parent=1 // pred_check_branch
      %1356 = sbr.rel (0) target = $region49
    $region48: #{tpu_custom_call.1} parent=1 // pred_region
      %s1358 = ssub.s32 32, 32
      %1359 = vsyncadd [#allocation4], %s1358
      %s1361 = sshll.u32 [#allocation3], 4
      %s1362 = int_to_ptr.vmem [resolvable:$true] %s1361
      %1364 = dma.vmem_to_hbm [thread:$0]  %s1362, 32, %s11, [#allocation4]
    $region49: #{tpu_custom_call.1} parent=1 // pred_fallthru
      _
    // Predicated region
    $region50: #{tpu_custom_call.1} parent=1 // pred_check
      _
    $region51: #{tpu_custom_call.1} parent=1 // pred_check_branch
      %1366 = sbr.rel (0) target = $region53
    $region52: #{tpu_custom_call.1} parent=1 // pred_region
      %1367 = dma.done [#allocation4], 32
    $region53: #{tpu_custom_call.1} parent=1 // pred_fallthru
      _
    %1368 = vsyncpa [#allocation4], 1

</llo_original>
